<compile_context>
chip_gen: v5e
topology: v5e:2x2
jax: 0.10.0
libtpu: 0.0.40
codegen_flags: <defaults>
</compile_context>

<pallas_src>
import jax
import jax.numpy as jnp
from jax.experimental import pallas as pl
from jax.experimental.pallas import tpu as pltpu

H = 14            # activation map height (fixed by conv_ior's Linear(49, 1))
W = 14            # activation map width
HW = H * W        # 196
LANES = 256       # lane-dense padded flat width (196 -> 256)
P = 7             # spatial size after 2x2 max pooling
PP = P + 2        # reflect-padded pooled size (9)
NEG = -1.0e30     # "-inf" stand-in that can never produce NaNs

# parameter table layout (single float32 SMEM array):
#   [0:9]   conv1 3x3 weights (row-major)
#   [9]     bn1 gamma      [10] bn1 beta
#   [11:20] conv2 3x3 weights
#   [20]    bn2 gamma      [21] bn2 beta
#   [22]    linear bias
PT_W1 = 0
PT_BN1 = 9
PT_W2 = 11
PT_BN2 = 20
PT_LB = 22
PT_LEN = 23


def _sum_all(x):
    # Full reduction to a broadcastable (1, 1, 1) value.
    return jnp.sum(jnp.sum(jnp.sum(x, axis=2, keepdims=True),
                           axis=1, keepdims=True), axis=0, keepdims=True)


def _bn_relu(x, gamma, beta, eps=1e-5):
    # Training-mode BatchNorm2d (one channel): biased batch stats, then ReLU.
    # mean and E[x^2] are reduced independently (one pass) -> var = E[x^2]-mean^2.
    n = float(x.shape[0] * x.shape[1] * x.shape[2])
    s1 = _sum_all(x)
    s2 = _sum_all(x * x)
    mean = s1 / n
    var = jnp.maximum(s2 / n - mean * mean, 0.0)
    y = (x - mean) * jax.lax.rsqrt(var + eps) * gamma + beta
    return jnp.maximum(y, 0.0)


def _conv3x3_from_padded(xp, ptab_ref, wbase, out_h, out_w):
    # xp is already reflect-padded to (out_h+2, out_w+2) in its last two dims;
    # the nine taps are contiguous value slices (no scratch, no boundary selects).
    acc = None
    for dr in range(3):
        for dc in range(3):
            term = ptab_ref[wbase + 3 * dr + dc] * xp[:, dr:dr + out_h, dc:dc + out_w]
            acc = term if acc is None else acc + term
    return acc


def agentnet_kernel(ptab_ref, flat_ref, twod_ref, out_ref):
    B = flat_ref.shape[1]

    # ---------------- flat, lane-dense (B, 256) path ----------------
    a_f = flat_ref[0]                         # actmap flat, lanes 196..255 are 0
    i_f = flat_ref[1]                         # ior flat
    g = flat_ref[2]                           # host-generated Gumbel(0,1) noise
    lane = jax.lax.broadcasted_iota(jnp.int32, (B, LANES), 1)
    valid = lane < HW

    prod_f = a_f * i_f                        # padded lanes stay 0
    out_ref[0] = prod_f                       # actmap_ior (dense 256-lane store)

    prod_m = jnp.where(valid, prod_f, NEG)
    m_p = jnp.max(prod_m, axis=1, keepdims=True)
    e_p = jnp.exp(prod_m - m_p)               # padded lanes underflow to 0
    s_p = jnp.sum(e_p, axis=1, keepdims=True)
    out_ref[1] = e_p / s_p                    # actmap_ior_sm

    # Categorical sample via Gumbel-max: argmax(logits + gumbel); padded lanes
    # sit at ~-1e30 and can never win.
    score = prod_m + g
    smax = jnp.max(score, axis=1, keepdims=True)
    cand = jnp.where(score >= smax, lane, HW)
    idx = jnp.min(cand, axis=1, keepdims=True)        # (B, 1) flat index, int32

    # attn_log_pi = log_softmax(flatten(actmap))[idx]
    a_m = jnp.where(valid, a_f, NEG)
    m_a = jnp.max(a_m, axis=1, keepdims=True)
    s_a = jnp.sum(jnp.exp(a_m - m_a), axis=1, keepdims=True)
    log_sm = (a_m - m_a) - jnp.log(s_a)
    logpi = jnp.sum(jnp.where(lane == idx, log_sm, 0.0), axis=1, keepdims=True)

    # idx -> (row, col) without integer division (exact for 0 <= idx < 196).
    idxf = idx.astype(jnp.float32)
    ysf = jnp.floor((idxf + 0.5) / float(W))
    xsf = idxf - ysf * float(W)
    fy = (ysf / float(H) - 0.5) * 2.0 * 0.95
    fx = (xsf / float(W) - 0.5) * 2.0 * 0.95

    # ---------------- conv_ior branch (2-D, reflect-pre-padded inputs) -------
    # reflect-pad commutes with the elementwise product, so the padded product
    # of the padded inputs IS the padded actmap_ior.
    prod_pad = twod_ref[0] * twod_ref[1]               # (B, 16, 16)
    c1 = _conv3x3_from_padded(prod_pad, ptab_ref, PT_W1, H, W)
    h1 = _bn_relu(c1, ptab_ref[PT_BN1], ptab_ref[PT_BN1 + 1])

    # MaxPool2d(2,2) + reflect padding for conv2, fused into two tiny one-hot
    # batched matmuls: m2 holds the 2x2 window max at every anchor of the valid
    # 13x13 region (even anchors never need pad); the column matmul picks
    # columns 2*reflect(j-1) (pool downselect + reflect pad in one), the row
    # matmul does the same for rows, yielding the padded (B, 9, 9) directly.
    m2 = jnp.maximum(
        jnp.maximum(h1[:, 0:H - 1, 0:W - 1], h1[:, 1:H, 0:W - 1]),
        jnp.maximum(h1[:, 0:H - 1, 1:W], h1[:, 1:H, 1:W]))            # (B,13,13)

    c13 = jax.lax.broadcasted_iota(jnp.int32, (B, H - 1, PP), 1)       # m2 col
    jpad = jax.lax.broadcasted_iota(jnp.int32, (B, H - 1, PP), 2) - 1  # padded col
    jref = jnp.where(jpad < 0, -jpad,
                     jnp.where(jpad > P - 1, 2 * (P - 1) - jpad, jpad))
    s_col = (c13 == 2 * jref).astype(jnp.float32)                      # (B,13,9)
    cp = jax.lax.dot_general(m2, s_col, (((2,), (1,)), ((0,), (0,))),
                             preferred_element_type=jnp.float32)       # (B,13,9)

    r13 = jax.lax.broadcasted_iota(jnp.int32, (B, PP, H - 1), 2)       # m2 row
    ipad = jax.lax.broadcasted_iota(jnp.int32, (B, PP, H - 1), 1) - 1  # padded row
    iref = jnp.where(ipad < 0, -ipad,
                     jnp.where(ipad > P - 1, 2 * (P - 1) - ipad, ipad))
    s_row = (r13 == 2 * iref).astype(jnp.float32)                      # (B,9,13)
    pooled_pad = jax.lax.dot_general(s_row, cp, (((2,), (1,)), ((0,), (0,))),
                                     preferred_element_type=jnp.float32)  # (B,9,9)

    c2 = _conv3x3_from_padded(pooled_pad, ptab_ref, PT_W2, P, P)
    h2 = _bn_relu(c2, ptab_ref[PT_BN2], ptab_ref[PT_BN2 + 1])

    # Flatten -> Linear(49, 1) -> Sigmoid ; * 50 + 10
    lw = twod_ref[2, 0, 0:P, 0:P]              # (7, 7) row-major == flat (49,)
    z = h2 * lw[None, :, :]
    dotsum = jnp.sum(jnp.sum(z, axis=2), axis=1, keepdims=True)        # (B, 1)
    logit = dotsum + ptab_ref[PT_LB]
    sig = 1.0 / (1.0 + jnp.exp(-logit))
    sigma = sig * 50.0 + 10.0

    # ------------- pack the four per-batch scalars lane-dense ----------------
    out_ref[2] = jnp.where(
        lane == 0, logpi,
        jnp.where(lane == 1, fx,
                  jnp.where(lane == 2, fy,
                            jnp.where(lane == 3, sigma, 0.0))))


def init_params(key):
    # Deterministic synthetic parameters (PyTorch-like init scales), pre-packed
    # into one SMEM scalar table + the (7,7) linear weight for the VMEM path.
    k1, k2, k3, k4 = jax.random.split(key, 4)
    b_conv = 1.0 / 3.0                         # ~1/sqrt(fan_in=9)
    w1 = jax.random.uniform(k1, (9,), jnp.float32, -b_conv, b_conv)
    w2 = jax.random.uniform(k2, (9,), jnp.float32, -b_conv, b_conv)
    bn1 = jnp.array([1.0, 0.0], jnp.float32)   # (gamma, beta) BatchNorm default init
    bn2 = jnp.array([1.0, 0.0], jnp.float32)
    b_lin = 1.0 / 7.0                          # 1/sqrt(49)
    lw = jax.random.uniform(k3, (P, P), jnp.float32, -b_lin, b_lin)
    lb = jax.random.uniform(k4, (1,), jnp.float32, -b_lin, b_lin)
    ptab = jnp.concatenate([w1, bn1, w2, bn2, lb]).astype(jnp.float32)
    assert ptab.shape == (PT_LEN,)
    return dict(ptab=ptab, lw=lw)


def agent_net_forward(params, img, actmap, ior, step, stage, seed):
    if step == 0:
        # TODO(synk): step==0 path needs fixations_backbone.CNNModel (+ conv5); backbone not provided.
        raise NotImplementedError("step == 0 requires the external CNN backbone")
    if stage != 2:
        # TODO(synk): stage==1 uses torch.randint; only the Categorical-sampling path (stage==2) is implemented.
        raise NotImplementedError("only stage == 2 is implemented")
    del img  # only used by the step==0 branch

    B, C, h, w = actmap.shape
    assert (C, h, w) == (1, H, W), "conv_ior's Linear(49,1) fixes the activation map to 1x14x14"
    # TODO(synk): F.interpolate(ior, W) with differing resolutions is glue-level resizing;
    # here ior is required to already be at the actmap resolution (interpolate == identity).
    assert ior.shape == actmap.shape

    a2d = actmap.reshape(B, H, W).astype(jnp.float32)
    i2d = ior.reshape(B, H, W).astype(jnp.float32)

    # One stacked 2-D input (3, B, 16, 16): reflect-pre-padded actmap / ior (so
    # the kernel's conv taps are plain contiguous slices) + the (7,7) Linear
    # weight parked in slab 2.  Padding here is layout plumbing (one XLA pad),
    # not hoisted compute.
    a_pad2d = jnp.pad(a2d, ((0, 0), (1, 1), (1, 1)), mode="reflect")
    i_pad2d = jnp.pad(i2d, ((0, 0), (1, 1), (1, 1)), mode="reflect")
    lw_slab = jnp.zeros((B, H + 2, W + 2), jnp.float32).at[0, :P, :P].set(params["lw"])
    twod = jnp.stack([a_pad2d, i_pad2d, lw_slab], axis=0)              # (3,B,16,16)

    # One stacked lane-dense flat input (3, B, 256): actmap / ior zero-padded
    # 196 -> 256 and the host-generated Gumbel noise for the categorical draw.
    a_fl = jnp.pad(actmap.reshape(B, HW).astype(jnp.float32), ((0, 0), (0, LANES - HW)))
    i_fl = jnp.pad(ior.reshape(B, HW).astype(jnp.float32), ((0, 0), (0, LANES - HW)))
    gum = jax.random.gumbel(jax.random.PRNGKey(seed), (B, LANES), jnp.float32)
    flat = jnp.stack([a_fl, i_fl, gum], axis=0)                        # (3,B,256)

    vmem = pl.BlockSpec(memory_space=pltpu.MemorySpace.VMEM)
    smem = pl.BlockSpec(memory_space=pltpu.MemorySpace.SMEM)

    # Single lane-dense output slab:
    #   [0, :, :196] actmap_ior   [1, :, :196] actmap_ior_sm
    #   [2, :, 0..3] log_pi, fix_x, fix_y, sigma
    out = pl.pallas_call(
        agentnet_kernel,
        out_shape=jax.ShapeDtypeStruct((3, B, LANES), jnp.float32),
        in_specs=[smem, vmem, vmem],
        out_specs=vmem,
    )(params["ptab"], flat, twod)

    aior = out[0, :, :HW].reshape(B, 1, H, W)
    aior_sm = out[1, :, :HW].reshape(B, 1, H, W)
    attn_log_pi = out[2, :, 0]
    fix_x = out[2, :, 1]
    fix_y = out[2, :, 2]
    ior_sigmas = out[2, :, 3:4]
    return fix_x, fix_y, actmap, aior, aior_sm, attn_log_pi, ior_sigmas


if __name__ == "__main__":
    key = jax.random.PRNGKey(0)
    k_img, k_act, k_ior, k_par = jax.random.split(key, 4)
    B = 2
    img = jax.random.normal(k_img, (B, 3, 224, 224), jnp.float32)    # unused when step != 0
    actmap = jax.random.normal(k_act, (B, 1, H, W), jnp.float32)
    ior = jax.random.uniform(k_ior, (B, 1, H, W), jnp.float32)
    params = init_params(k_par)

    outs = agent_net_forward(params, img, actmap, ior, step=1, stage=2, seed=1234)
    outs = jax.block_until_ready(outs)
    fix_x, fix_y, amap, amap_ior, amap_ior_sm, attn_log_pi, ior_sigmas = outs

    assert fix_x.shape == (B,) and fix_y.shape == (B,)
    assert amap.shape == (B, 1, H, W)
    assert amap_ior.shape == (B, 1, H, W) and amap_ior_sm.shape == (B, 1, H, W)
    assert attn_log_pi.shape == (B,) and ior_sigmas.shape == (B, 1)
    assert bool(jnp.all(jnp.abs(fix_x) <= 0.95)) and bool(jnp.all(jnp.abs(fix_y) <= 0.95))
    assert bool(jnp.all(ior_sigmas >= 10.0)) and bool(jnp.all(ior_sigmas <= 60.0))
    assert abs(float(jnp.sum(amap_ior_sm)) - B) < 1e-3   # softmax rows sum to 1
    assert bool(jnp.all(attn_log_pi <= 0.0))             # log-probabilities

    print("KERNEL_OK")
</pallas_src>

<mosaic_0001>
module attributes {stable_mosaic.version = 11 : i64} {
  func.func @agentnet_kernel(%arg0: memref<23xf32, #tpu.memory_space<smem>>, %arg1: memref<3x2x256xf32, #tpu.memory_space<vmem>>, %arg2: memref<3x2x16x16xf32, #tpu.memory_space<vmem>>, %arg3: memref<3x2x256xf32, #tpu.memory_space<vmem>>) attributes {dimension_semantics = [], scalar_prefetch = 0 : i64, scratch_operands = 0 : i64, tpu.core_type = #tpu.core_type<tc>} {
    %c0 = arith.constant 0 : index
    %c0_0 = arith.constant 0 : index
    %c0_1 = arith.constant 0 : index
    %0 = vector.load %arg1[%c0, %c0_0, %c0_1] : memref<3x2x256xf32, #tpu.memory_space<vmem>>, vector<1x2x256xf32>
    %1 = vector.shape_cast %0 : vector<1x2x256xf32> to vector<2x256xf32>
    %c1 = arith.constant 1 : index
    %c0_2 = arith.constant 0 : index
    %c0_3 = arith.constant 0 : index
    %2 = vector.load %arg1[%c1, %c0_2, %c0_3] : memref<3x2x256xf32, #tpu.memory_space<vmem>>, vector<1x2x256xf32>
    %3 = vector.shape_cast %2 : vector<1x2x256xf32> to vector<2x256xf32>
    %c2 = arith.constant 2 : index
    %c0_4 = arith.constant 0 : index
    %c0_5 = arith.constant 0 : index
    %4 = vector.load %arg1[%c2, %c0_4, %c0_5] : memref<3x2x256xf32, #tpu.memory_space<vmem>>, vector<1x2x256xf32>
    %5 = vector.shape_cast %4 : vector<1x2x256xf32> to vector<2x256xf32>
    %6 = tpu.iota {dimensions = array<i32: 1>} : vector<2x256xi32>
    %c196_i32 = arith.constant 196 : i32
    %7 = vector.broadcast %c196_i32 : i32 to vector<2x256xi32>
    %8 = arith.cmpi slt, %6, %7 : vector<2x256xi32>
    %9 = arith.mulf %1, %3 : vector<2x256xf32>
    %c0_6 = arith.constant 0 : index
    %c0_7 = arith.constant 0 : index
    %c0_8 = arith.constant 0 : index
    %10 = vector.load %arg3[%c0_6, %c0_7, %c0_8] : memref<3x2x256xf32, #tpu.memory_space<vmem>>, vector<1x2x256xf32>
    %11 = vector.shape_cast %10 : vector<1x2x256xf32> to vector<2x256xf32>
    %12 = vector.shape_cast %9 : vector<2x256xf32> to vector<1x2x256xf32>
    tpu.vector_store %arg3[%c0_6, %c0_7, %c0_8], %12 {strides = array<i32>} : memref<3x2x256xf32, #tpu.memory_space<vmem>>, vector<1x2x256xf32>,
    %cst = arith.constant -1.000000e+30 : f32
    %13 = vector.broadcast %cst : f32 to vector<2x256xf32>
    %14 = arith.select %8, %9, %13 : vector<2x256xi1>, vector<2x256xf32>
    %cst_9 = arith.constant dense<0xFF800000> : vector<2xf32>
    %15 = vector.multi_reduction <maximumf>, %14, %cst_9 [1] : vector<2x256xf32> to vector<2xf32>
    %16 = vector.shape_cast %15 : vector<2xf32> to vector<2x1xf32>
    %17 = vector.broadcast %16 : vector<2x1xf32> to vector<2x256xf32>
    %18 = arith.subf %14, %17 : vector<2x256xf32>
    %19 = math.exp %18 : vector<2x256xf32>
    %cst_10 = arith.constant dense<0.000000e+00> : vector<2xf32>
    %20 = vector.multi_reduction <add>, %19, %cst_10 [1] : vector<2x256xf32> to vector<2xf32>
    %21 = vector.shape_cast %20 : vector<2xf32> to vector<2x1xf32>
    %22 = vector.broadcast %21 : vector<2x1xf32> to vector<2x256xf32>
    %23 = arith.divf %19, %22 : vector<2x256xf32>
    %c1_11 = arith.constant 1 : index
    %c0_12 = arith.constant 0 : index
    %c0_13 = arith.constant 0 : index
    %24 = vector.load %arg3[%c1_11, %c0_12, %c0_13] : memref<3x2x256xf32, #tpu.memory_space<vmem>>, vector<1x2x256xf32>
    %25 = vector.shape_cast %24 : vector<1x2x256xf32> to vector<2x256xf32>
    %26 = vector.shape_cast %23 : vector<2x256xf32> to vector<1x2x256xf32>
    tpu.vector_store %arg3[%c1_11, %c0_12, %c0_13], %26 {strides = array<i32>} : memref<3x2x256xf32, #tpu.memory_space<vmem>>, vector<1x2x256xf32>,
    %27 = arith.addf %14, %5 : vector<2x256xf32>
    %cst_14 = arith.constant dense<0xFF800000> : vector<2xf32>
    %28 = vector.multi_reduction <maximumf>, %27, %cst_14 [1] : vector<2x256xf32> to vector<2xf32>
    %29 = vector.shape_cast %28 : vector<2xf32> to vector<2x1xf32>
    %30 = vector.broadcast %29 : vector<2x1xf32> to vector<2x256xf32>
    %31 = arith.cmpf oge, %27, %30 : vector<2x256xf32>
    %c196_i32_15 = arith.constant 196 : i32
    %32 = vector.broadcast %c196_i32_15 : i32 to vector<2x256xi32>
    %33 = arith.select %31, %6, %32 : vector<2x256xi1>, vector<2x256xi32>
    %cst_16 = arith.constant dense<2147483647> : vector<2xi32>
    %34 = vector.multi_reduction <minsi>, %33, %cst_16 [1] : vector<2x256xi32> to vector<2xi32>
    %35 = vector.shape_cast %34 : vector<2xi32> to vector<2x1xi32>
    %cst_17 = arith.constant -1.000000e+30 : f32
    %36 = vector.broadcast %cst_17 : f32 to vector<2x256xf32>
    %37 = arith.select %8, %1, %36 : vector<2x256xi1>, vector<2x256xf32>
    %cst_18 = arith.constant dense<0xFF800000> : vector<2xf32>
    %38 = vector.multi_reduction <maximumf>, %37, %cst_18 [1] : vector<2x256xf32> to vector<2xf32>
    %39 = vector.shape_cast %38 : vector<2xf32> to vector<2x1xf32>
    %40 = vector.broadcast %39 : vector<2x1xf32> to vector<2x256xf32>
    %41 = arith.subf %37, %40 : vector<2x256xf32>
    %42 = math.exp %41 : vector<2x256xf32>
    %cst_19 = arith.constant dense<0.000000e+00> : vector<2xf32>
    %43 = vector.multi_reduction <add>, %42, %cst_19 [1] : vector<2x256xf32> to vector<2xf32>
    %44 = vector.shape_cast %43 : vector<2xf32> to vector<2x1xf32>
    %45 = vector.broadcast %39 : vector<2x1xf32> to vector<2x256xf32>
    %46 = arith.subf %37, %45 : vector<2x256xf32>
    %47 = math.log %44 : vector<2x1xf32>
    %48 = vector.broadcast %47 : vector<2x1xf32> to vector<2x256xf32>
    %49 = arith.subf %46, %48 : vector<2x256xf32>
    %50 = vector.broadcast %35 : vector<2x1xi32> to vector<2x256xi32>
    %51 = arith.cmpi eq, %6, %50 : vector<2x256xi32>
    %cst_20 = arith.constant 0.000000e+00 : f32
    %52 = vector.broadcast %cst_20 : f32 to vector<2x256xf32>
    %53 = arith.select %51, %49, %52 : vector<2x256xi1>, vector<2x256xf32>
    %cst_21 = arith.constant dense<0.000000e+00> : vector<2xf32>
    %54 = vector.multi_reduction <add>, %53, %cst_21 [1] : vector<2x256xf32> to vector<2xf32>
    %55 = vector.shape_cast %54 : vector<2xf32> to vector<2x1xf32>
    %56 = arith.sitofp %35 : vector<2x1xi32> to vector<2x1xf32>
    %cst_22 = arith.constant 5.000000e-01 : f32
    %57 = vector.broadcast %cst_22 : f32 to vector<2x1xf32>
    %58 = arith.addf %56, %57 : vector<2x1xf32>
    %cst_23 = arith.constant 1.400000e+01 : f32
    %59 = vector.broadcast %cst_23 : f32 to vector<2x1xf32>
    %60 = arith.divf %58, %59 : vector<2x1xf32>
    %61 = math.floor %60 : vector<2x1xf32>
    %cst_24 = arith.constant 1.400000e+01 : f32
    %62 = vector.broadcast %cst_24 : f32 to vector<2x1xf32>
    %63 = arith.mulf %61, %62 : vector<2x1xf32>
    %64 = arith.subf %56, %63 : vector<2x1xf32>
    %cst_25 = arith.constant 1.400000e+01 : f32
    %65 = vector.broadcast %cst_25 : f32 to vector<2x1xf32>
    %66 = arith.divf %61, %65 : vector<2x1xf32>
    %cst_26 = arith.constant 5.000000e-01 : f32
    %67 = vector.broadcast %cst_26 : f32 to vector<2x1xf32>
    %68 = arith.subf %66, %67 : vector<2x1xf32>
    %cst_27 = arith.constant 2.000000e+00 : f32
    %69 = vector.broadcast %cst_27 : f32 to vector<2x1xf32>
    %70 = arith.mulf %68, %69 : vector<2x1xf32>
    %cst_28 = arith.constant 0.949999988 : f32
    %71 = vector.broadcast %cst_28 : f32 to vector<2x1xf32>
    %72 = arith.mulf %70, %71 : vector<2x1xf32>
    %cst_29 = arith.constant 1.400000e+01 : f32
    %73 = vector.broadcast %cst_29 : f32 to vector<2x1xf32>
    %74 = arith.divf %64, %73 : vector<2x1xf32>
    %cst_30 = arith.constant 5.000000e-01 : f32
    %75 = vector.broadcast %cst_30 : f32 to vector<2x1xf32>
    %76 = arith.subf %74, %75 : vector<2x1xf32>
    %cst_31 = arith.constant 2.000000e+00 : f32
    %77 = vector.broadcast %cst_31 : f32 to vector<2x1xf32>
    %78 = arith.mulf %76, %77 : vector<2x1xf32>
    %cst_32 = arith.constant 0.949999988 : f32
    %79 = vector.broadcast %cst_32 : f32 to vector<2x1xf32>
    %80 = arith.mulf %78, %79 : vector<2x1xf32>
    %c0_33 = arith.constant 0 : index
    %c0_34 = arith.constant 0 : index
    %c0_35 = arith.constant 0 : index
    %c0_36 = arith.constant 0 : index
    %81 = vector.load %arg2[%c0_33, %c0_34, %c0_35, %c0_36] : memref<3x2x16x16xf32, #tpu.memory_space<vmem>>, vector<1x2x16x16xf32>
    %82 = vector.shape_cast %81 : vector<1x2x16x16xf32> to vector<2x16x16xf32>
    %c1_37 = arith.constant 1 : index
    %c0_38 = arith.constant 0 : index
    %c0_39 = arith.constant 0 : index
    %c0_40 = arith.constant 0 : index
    %83 = vector.load %arg2[%c1_37, %c0_38, %c0_39, %c0_40] : memref<3x2x16x16xf32, #tpu.memory_space<vmem>>, vector<1x2x16x16xf32>
    %84 = vector.shape_cast %83 : vector<1x2x16x16xf32> to vector<2x16x16xf32>
    %85 = arith.mulf %82, %84 : vector<2x16x16xf32>
    %c0_41 = arith.constant 0 : index
    %86 = memref.load %arg0[%c0_41] : memref<23xf32, #tpu.memory_space<smem>>
    %87 = vector.extract_strided_slice %85 {offsets = [0, 0, 0], sizes = [2, 14, 14], strides = [1, 1, 1]} : vector<2x16x16xf32> to vector<2x14x14xf32>
    %88 = vector.broadcast %86 : f32 to vector<2x14x14xf32>
    %89 = arith.mulf %88, %87 : vector<2x14x14xf32>
    %c1_42 = arith.constant 1 : index
    %90 = memref.load %arg0[%c1_42] : memref<23xf32, #tpu.memory_space<smem>>
    %91 = vector.extract_strided_slice %85 {offsets = [0, 0, 1], sizes = [2, 14, 14], strides = [1, 1, 1]} : vector<2x16x16xf32> to vector<2x14x14xf32>
    %92 = vector.broadcast %90 : f32 to vector<2x14x14xf32>
    %93 = arith.mulf %92, %91 : vector<2x14x14xf32>
    %94 = arith.addf %89, %93 : vector<2x14x14xf32>
    %c2_43 = arith.constant 2 : index
    %95 = memref.load %arg0[%c2_43] : memref<23xf32, #tpu.memory_space<smem>>
    %96 = vector.extract_strided_slice %85 {offsets = [0, 0, 2], sizes = [2, 14, 14], strides = [1, 1, 1]} : vector<2x16x16xf32> to vector<2x14x14xf32>
    %97 = vector.broadcast %95 : f32 to vector<2x14x14xf32>
    %98 = arith.mulf %97, %96 : vector<2x14x14xf32>
    %99 = arith.addf %94, %98 : vector<2x14x14xf32>
    %c3 = arith.constant 3 : index
    %100 = memref.load %arg0[%c3] : memref<23xf32, #tpu.memory_space<smem>>
    %101 = vector.extract_strided_slice %85 {offsets = [0, 1, 0], sizes = [2, 14, 14], strides = [1, 1, 1]} : vector<2x16x16xf32> to vector<2x14x14xf32>
    %102 = vector.broadcast %100 : f32 to vector<2x14x14xf32>
    %103 = arith.mulf %102, %101 : vector<2x14x14xf32>
    %104 = arith.addf %99, %103 : vector<2x14x14xf32>
    %c4 = arith.constant 4 : index
    %105 = memref.load %arg0[%c4] : memref<23xf32, #tpu.memory_space<smem>>
    %106 = vector.extract_strided_slice %85 {offsets = [0, 1, 1], sizes = [2, 14, 14], strides = [1, 1, 1]} : vector<2x16x16xf32> to vector<2x14x14xf32>
    %107 = vector.broadcast %105 : f32 to vector<2x14x14xf32>
    %108 = arith.mulf %107, %106 : vector<2x14x14xf32>
    %109 = arith.addf %104, %108 : vector<2x14x14xf32>
    %c5 = arith.constant 5 : index
    %110 = memref.load %arg0[%c5] : memref<23xf32, #tpu.memory_space<smem>>
    %111 = vector.extract_strided_slice %85 {offsets = [0, 1, 2], sizes = [2, 14, 14], strides = [1, 1, 1]} : vector<2x16x16xf32> to vector<2x14x14xf32>
    %112 = vector.broadcast %110 : f32 to vector<2x14x14xf32>
    %113 = arith.mulf %112, %111 : vector<2x14x14xf32>
    %114 = arith.addf %109, %113 : vector<2x14x14xf32>
    %c6 = arith.constant 6 : index
    %115 = memref.load %arg0[%c6] : memref<23xf32, #tpu.memory_space<smem>>
    %116 = vector.extract_strided_slice %85 {offsets = [0, 2, 0], sizes = [2, 14, 14], strides = [1, 1, 1]} : vector<2x16x16xf32> to vector<2x14x14xf32>
    %117 = vector.broadcast %115 : f32 to vector<2x14x14xf32>
    %118 = arith.mulf %117, %116 : vector<2x14x14xf32>
    %119 = arith.addf %114, %118 : vector<2x14x14xf32>
    %c7 = arith.constant 7 : index
    %120 = memref.load %arg0[%c7] : memref<23xf32, #tpu.memory_space<smem>>
    %121 = vector.extract_strided_slice %85 {offsets = [0, 2, 1], sizes = [2, 14, 14], strides = [1, 1, 1]} : vector<2x16x16xf32> to vector<2x14x14xf32>
    %122 = vector.broadcast %120 : f32 to vector<2x14x14xf32>
    %123 = arith.mulf %122, %121 : vector<2x14x14xf32>
    %124 = arith.addf %119, %123 : vector<2x14x14xf32>
    %c8 = arith.constant 8 : index
    %125 = memref.load %arg0[%c8] : memref<23xf32, #tpu.memory_space<smem>>
    %126 = vector.extract_strided_slice %85 {offsets = [0, 2, 2], sizes = [2, 14, 14], strides = [1, 1, 1]} : vector<2x16x16xf32> to vector<2x14x14xf32>
    %127 = vector.broadcast %125 : f32 to vector<2x14x14xf32>
    %128 = arith.mulf %127, %126 : vector<2x14x14xf32>
    %129 = arith.addf %124, %128 : vector<2x14x14xf32>
    %c9 = arith.constant 9 : index
    %130 = memref.load %arg0[%c9] : memref<23xf32, #tpu.memory_space<smem>>
    %c10 = arith.constant 10 : index
    %131 = memref.load %arg0[%c10] : memref<23xf32, #tpu.memory_space<smem>>
    %cst_44 = arith.constant dense<0.000000e+00> : vector<2x14xf32>
    %132 = vector.multi_reduction <add>, %129, %cst_44 [2] : vector<2x14x14xf32> to vector<2x14xf32>
    %133 = vector.shape_cast %132 : vector<2x14xf32> to vector<2x14x1xf32>
    %cst_45 = arith.constant dense<0.000000e+00> : vector<2x1xf32>
    %134 = vector.multi_reduction <add>, %133, %cst_45 [1] : vector<2x14x1xf32> to vector<2x1xf32>
    %135 = vector.shape_cast %134 : vector<2x1xf32> to vector<2x1x1xf32>
    %cst_46 = arith.constant dense<0.000000e+00> : vector<1x1xf32>
    %136 = vector.multi_reduction <add>, %135, %cst_46 [0] : vector<2x1x1xf32> to vector<1x1xf32>
    %137 = vector.shape_cast %136 : vector<1x1xf32> to vector<1x1x1xf32>
    %138 = arith.mulf %129, %129 : vector<2x14x14xf32>
    %cst_47 = arith.constant dense<0.000000e+00> : vector<2x14xf32>
    %139 = vector.multi_reduction <add>, %138, %cst_47 [2] : vector<2x14x14xf32> to vector<2x14xf32>
    %140 = vector.shape_cast %139 : vector<2x14xf32> to vector<2x14x1xf32>
    %cst_48 = arith.constant dense<0.000000e+00> : vector<2x1xf32>
    %141 = vector.multi_reduction <add>, %140, %cst_48 [1] : vector<2x14x1xf32> to vector<2x1xf32>
    %142 = vector.shape_cast %141 : vector<2x1xf32> to vector<2x1x1xf32>
    %cst_49 = arith.constant dense<0.000000e+00> : vector<1x1xf32>
    %143 = vector.multi_reduction <add>, %142, %cst_49 [0] : vector<2x1x1xf32> to vector<1x1xf32>
    %144 = vector.shape_cast %143 : vector<1x1xf32> to vector<1x1x1xf32>
    %cst_50 = arith.constant 3.920000e+02 : f32
    %145 = vector.broadcast %cst_50 : f32 to vector<1x1x1xf32>
    %146 = arith.divf %137, %145 : vector<1x1x1xf32>
    %cst_51 = arith.constant 3.920000e+02 : f32
    %147 = vector.broadcast %cst_51 : f32 to vector<1x1x1xf32>
    %148 = arith.divf %144, %147 : vector<1x1x1xf32>
    %149 = arith.mulf %146, %146 : vector<1x1x1xf32>
    %150 = arith.subf %148, %149 : vector<1x1x1xf32>
    %cst_52 = arith.constant 0.000000e+00 : f32
    %151 = vector.broadcast %cst_52 : f32 to vector<1x1x1xf32>
    %152 = arith.maximumf %150, %151 : vector<1x1x1xf32>
    %153 = vector.broadcast %146 : vector<1x1x1xf32> to vector<2x14x14xf32>
    %154 = arith.subf %129, %153 : vector<2x14x14xf32>
    %cst_53 = arith.constant 9.99999974E-6 : f32
    %155 = vector.broadcast %cst_53 : f32 to vector<1x1x1xf32>
    %156 = arith.addf %152, %155 : vector<1x1x1xf32>
    %157 = math.rsqrt %156 : vector<1x1x1xf32>
    %158 = vector.broadcast %157 : vector<1x1x1xf32> to vector<2x14x14xf32>
    %159 = arith.mulf %154, %158 : vector<2x14x14xf32>
    %160 = vector.broadcast %130 : f32 to vector<2x14x14xf32>
    %161 = arith.mulf %159, %160 : vector<2x14x14xf32>
    %162 = vector.broadcast %131 : f32 to vector<2x14x14xf32>
    %163 = arith.addf %161, %162 : vector<2x14x14xf32>
    %cst_54 = arith.constant 0.000000e+00 : f32
    %164 = vector.broadcast %cst_54 : f32 to vector<2x14x14xf32>
    %165 = arith.maximumf %163, %164 : vector<2x14x14xf32>
    %166 = vector.extract_strided_slice %165 {offsets = [0, 0, 0], sizes = [2, 13, 13], strides = [1, 1, 1]} : vector<2x14x14xf32> to vector<2x13x13xf32>
    %167 = vector.extract_strided_slice %165 {offsets = [0, 1, 0], sizes = [2, 13, 13], strides = [1, 1, 1]} : vector<2x14x14xf32> to vector<2x13x13xf32>
    %168 = arith.maximumf %166, %167 : vector<2x13x13xf32>
    %169 = vector.extract_strided_slice %165 {offsets = [0, 0, 1], sizes = [2, 13, 13], strides = [1, 1, 1]} : vector<2x14x14xf32> to vector<2x13x13xf32>
    %170 = vector.extract_strided_slice %165 {offsets = [0, 1, 1], sizes = [2, 13, 13], strides = [1, 1, 1]} : vector<2x14x14xf32> to vector<2x13x13xf32>
    %171 = arith.maximumf %169, %170 : vector<2x13x13xf32>
    %172 = arith.maximumf %168, %171 : vector<2x13x13xf32>
    %173 = tpu.iota {dimensions = array<i32: 1>} : vector<2x13x9xi32>
    %174 = tpu.iota {dimensions = array<i32: 2>} : vector<2x13x9xi32>
    %c1_i32 = arith.constant 1 : i32
    %175 = vector.broadcast %c1_i32 : i32 to vector<2x13x9xi32>
    %176 = arith.subi %174, %175 : vector<2x13x9xi32>
    %c0_i32 = arith.constant 0 : i32
    %177 = vector.broadcast %c0_i32 : i32 to vector<2x13x9xi32>
    %178 = arith.cmpi slt, %176, %177 : vector<2x13x9xi32>
    %c0_i32_55 = arith.constant 0 : i32
    %179 = vector.broadcast %c0_i32_55 : i32 to vector<2x13x9xi32>
    %180 = arith.subi %179, %176 : vector<2x13x9xi32>
    %c6_i32 = arith.constant 6 : i32
    %181 = vector.broadcast %c6_i32 : i32 to vector<2x13x9xi32>
    %182 = arith.cmpi sgt, %176, %181 : vector<2x13x9xi32>
    %c12_i32 = arith.constant 12 : i32
    %183 = vector.broadcast %c12_i32 : i32 to vector<2x13x9xi32>
    %184 = arith.subi %183, %176 : vector<2x13x9xi32>
    %185 = arith.select %182, %184, %176 : vector<2x13x9xi1>, vector<2x13x9xi32>
    %186 = arith.select %178, %180, %185 : vector<2x13x9xi1>, vector<2x13x9xi32>
    %c2_i32 = arith.constant 2 : i32
    %187 = vector.broadcast %c2_i32 : i32 to vector<2x13x9xi32>
    %188 = arith.muli %187, %186 : vector<2x13x9xi32>
    %189 = arith.cmpi eq, %173, %188 : vector<2x13x9xi32>
    %190 = arith.extui %189 : vector<2x13x9xi1> to vector<2x13x9xi32>
    %191 = arith.sitofp %190 : vector<2x13x9xi32> to vector<2x13x9xf32>
    %cst_56 = arith.constant dense<0.000000e+00> : vector<2x13x9xf32>
    %192 = tpu.matmul %172, %191, %cst_56 {dimension_numbers = #tpu.dot_dimension_numbers<[2], [1], [1], [2], [0, 0, 0, 1, 1, 2], [0], [0]>} : vector<2x13x13xf32>, vector<2x13x9xf32>, vector<2x13x9xf32> -> vector<2x13x9xf32>
    %193 = tpu.iota {dimensions = array<i32: 2>} : vector<2x9x13xi32>
    %194 = tpu.iota {dimensions = array<i32: 1>} : vector<2x9x13xi32>
    %c1_i32_57 = arith.constant 1 : i32
    %195 = vector.broadcast %c1_i32_57 : i32 to vector<2x9x13xi32>
    %196 = arith.subi %194, %195 : vector<2x9x13xi32>
    %c0_i32_58 = arith.constant 0 : i32
    %197 = vector.broadcast %c0_i32_58 : i32 to vector<2x9x13xi32>
    %198 = arith.cmpi slt, %196, %197 : vector<2x9x13xi32>
    %c0_i32_59 = arith.constant 0 : i32
    %199 = vector.broadcast %c0_i32_59 : i32 to vector<2x9x13xi32>
    %200 = arith.subi %199, %196 : vector<2x9x13xi32>
    %c6_i32_60 = arith.constant 6 : i32
    %201 = vector.broadcast %c6_i32_60 : i32 to vector<2x9x13xi32>
    %202 = arith.cmpi sgt, %196, %201 : vector<2x9x13xi32>
    %c12_i32_61 = arith.constant 12 : i32
    %203 = vector.broadcast %c12_i32_61 : i32 to vector<2x9x13xi32>
    %204 = arith.subi %203, %196 : vector<2x9x13xi32>
    %205 = arith.select %202, %204, %196 : vector<2x9x13xi1>, vector<2x9x13xi32>
    %206 = arith.select %198, %200, %205 : vector<2x9x13xi1>, vector<2x9x13xi32>
    %c2_i32_62 = arith.constant 2 : i32
    %207 = vector.broadcast %c2_i32_62 : i32 to vector<2x9x13xi32>
    %208 = arith.muli %207, %206 : vector<2x9x13xi32>
    %209 = arith.cmpi eq, %193, %208 : vector<2x9x13xi32>
    %210 = arith.extui %209 : vector<2x9x13xi1> to vector<2x9x13xi32>
    %211 = arith.sitofp %210 : vector<2x9x13xi32> to vector<2x9x13xf32>
    %cst_63 = arith.constant dense<0.000000e+00> : vector<2x9x9xf32>
    %212 = tpu.matmul %211, %192, %cst_63 {dimension_numbers = #tpu.dot_dimension_numbers<[2], [1], [1], [2], [0, 0, 0, 1, 1, 2], [0], [0]>} : vector<2x9x13xf32>, vector<2x13x9xf32>, vector<2x9x9xf32> -> vector<2x9x9xf32>
    %c11 = arith.constant 11 : index
    %213 = memref.load %arg0[%c11] : memref<23xf32, #tpu.memory_space<smem>>
    %214 = vector.extract_strided_slice %212 {offsets = [0, 0, 0], sizes = [2, 7, 7], strides = [1, 1, 1]} : vector<2x9x9xf32> to vector<2x7x7xf32>
    %215 = vector.broadcast %213 : f32 to vector<2x7x7xf32>
    %216 = arith.mulf %215, %214 : vector<2x7x7xf32>
    %c12 = arith.constant 12 : index
    %217 = memref.load %arg0[%c12] : memref<23xf32, #tpu.memory_space<smem>>
    %218 = vector.extract_strided_slice %212 {offsets = [0, 0, 1], sizes = [2, 7, 7], strides = [1, 1, 1]} : vector<2x9x9xf32> to vector<2x7x7xf32>
    %219 = vector.broadcast %217 : f32 to vector<2x7x7xf32>
    %220 = arith.mulf %219, %218 : vector<2x7x7xf32>
    %221 = arith.addf %216, %220 : vector<2x7x7xf32>
    %c13 = arith.constant 13 : index
    %222 = memref.load %arg0[%c13] : memref<23xf32, #tpu.memory_space<smem>>
    %223 = vector.extract_strided_slice %212 {offsets = [0, 0, 2], sizes = [2, 7, 7], strides = [1, 1, 1]} : vector<2x9x9xf32> to vector<2x7x7xf32>
    %224 = vector.broadcast %222 : f32 to vector<2x7x7xf32>
    %225 = arith.mulf %224, %223 : vector<2x7x7xf32>
    %226 = arith.addf %221, %225 : vector<2x7x7xf32>
    %c14 = arith.constant 14 : index
    %227 = memref.load %arg0[%c14] : memref<23xf32, #tpu.memory_space<smem>>
    %228 = vector.extract_strided_slice %212 {offsets = [0, 1, 0], sizes = [2, 7, 7], strides = [1, 1, 1]} : vector<2x9x9xf32> to vector<2x7x7xf32>
    %229 = vector.broadcast %227 : f32 to vector<2x7x7xf32>
    %230 = arith.mulf %229, %228 : vector<2x7x7xf32>
    %231 = arith.addf %226, %230 : vector<2x7x7xf32>
    %c15 = arith.constant 15 : index
    %232 = memref.load %arg0[%c15] : memref<23xf32, #tpu.memory_space<smem>>
    %233 = vector.extract_strided_slice %212 {offsets = [0, 1, 1], sizes = [2, 7, 7], strides = [1, 1, 1]} : vector<2x9x9xf32> to vector<2x7x7xf32>
    %234 = vector.broadcast %232 : f32 to vector<2x7x7xf32>
    %235 = arith.mulf %234, %233 : vector<2x7x7xf32>
    %236 = arith.addf %231, %235 : vector<2x7x7xf32>
    %c16 = arith.constant 16 : index
    %237 = memref.load %arg0[%c16] : memref<23xf32, #tpu.memory_space<smem>>
    %238 = vector.extract_strided_slice %212 {offsets = [0, 1, 2], sizes = [2, 7, 7], strides = [1, 1, 1]} : vector<2x9x9xf32> to vector<2x7x7xf32>
    %239 = vector.broadcast %237 : f32 to vector<2x7x7xf32>
    %240 = arith.mulf %239, %238 : vector<2x7x7xf32>
    %241 = arith.addf %236, %240 : vector<2x7x7xf32>
    %c17 = arith.constant 17 : index
    %242 = memref.load %arg0[%c17] : memref<23xf32, #tpu.memory_space<smem>>
    %243 = vector.extract_strided_slice %212 {offsets = [0, 2, 0], sizes = [2, 7, 7], strides = [1, 1, 1]} : vector<2x9x9xf32> to vector<2x7x7xf32>
    %244 = vector.broadcast %242 : f32 to vector<2x7x7xf32>
    %245 = arith.mulf %244, %243 : vector<2x7x7xf32>
    %246 = arith.addf %241, %245 : vector<2x7x7xf32>
    %c18 = arith.constant 18 : index
    %247 = memref.load %arg0[%c18] : memref<23xf32, #tpu.memory_space<smem>>
    %248 = vector.extract_strided_slice %212 {offsets = [0, 2, 1], sizes = [2, 7, 7], strides = [1, 1, 1]} : vector<2x9x9xf32> to vector<2x7x7xf32>
    %249 = vector.broadcast %247 : f32 to vector<2x7x7xf32>
    %250 = arith.mulf %249, %248 : vector<2x7x7xf32>
    %251 = arith.addf %246, %250 : vector<2x7x7xf32>
    %c19 = arith.constant 19 : index
    %252 = memref.load %arg0[%c19] : memref<23xf32, #tpu.memory_space<smem>>
    %253 = vector.extract_strided_slice %212 {offsets = [0, 2, 2], sizes = [2, 7, 7], strides = [1, 1, 1]} : vector<2x9x9xf32> to vector<2x7x7xf32>
    %254 = vector.broadcast %252 : f32 to vector<2x7x7xf32>
    %255 = arith.mulf %254, %253 : vector<2x7x7xf32>
    %256 = arith.addf %251, %255 : vector<2x7x7xf32>
    %c20 = arith.constant 20 : index
    %257 = memref.load %arg0[%c20] : memref<23xf32, #tpu.memory_space<smem>>
    %c21 = arith.constant 21 : index
    %258 = memref.load %arg0[%c21] : memref<23xf32, #tpu.memory_space<smem>>
    %cst_64 = arith.constant dense<0.000000e+00> : vector<2x7xf32>
    %259 = vector.multi_reduction <add>, %256, %cst_64 [2] : vector<2x7x7xf32> to vector<2x7xf32>
    %260 = vector.shape_cast %259 : vector<2x7xf32> to vector<2x7x1xf32>
    %cst_65 = arith.constant dense<0.000000e+00> : vector<2x1xf32>
    %261 = vector.multi_reduction <add>, %260, %cst_65 [1] : vector<2x7x1xf32> to vector<2x1xf32>
    %262 = vector.shape_cast %261 : vector<2x1xf32> to vector<2x1x1xf32>
    %cst_66 = arith.constant dense<0.000000e+00> : vector<1x1xf32>
    %263 = vector.multi_reduction <add>, %262, %cst_66 [0] : vector<2x1x1xf32> to vector<1x1xf32>
    %264 = vector.shape_cast %263 : vector<1x1xf32> to vector<1x1x1xf32>
    %265 = arith.mulf %256, %256 : vector<2x7x7xf32>
    %cst_67 = arith.constant dense<0.000000e+00> : vector<2x7xf32>
    %266 = vector.multi_reduction <add>, %265, %cst_67 [2] : vector<2x7x7xf32> to vector<2x7xf32>
    %267 = vector.shape_cast %266 : vector<2x7xf32> to vector<2x7x1xf32>
    %cst_68 = arith.constant dense<0.000000e+00> : vector<2x1xf32>
    %268 = vector.multi_reduction <add>, %267, %cst_68 [1] : vector<2x7x1xf32> to vector<2x1xf32>
    %269 = vector.shape_cast %268 : vector<2x1xf32> to vector<2x1x1xf32>
    %cst_69 = arith.constant dense<0.000000e+00> : vector<1x1xf32>
    %270 = vector.multi_reduction <add>, %269, %cst_69 [0] : vector<2x1x1xf32> to vector<1x1xf32>
    %271 = vector.shape_cast %270 : vector<1x1xf32> to vector<1x1x1xf32>
    %cst_70 = arith.constant 9.800000e+01 : f32
    %272 = vector.broadcast %cst_70 : f32 to vector<1x1x1xf32>
    %273 = arith.divf %264, %272 : vector<1x1x1xf32>
    %cst_71 = arith.constant 9.800000e+01 : f32
    %274 = vector.broadcast %cst_71 : f32 to vector<1x1x1xf32>
    %275 = arith.divf %271, %274 : vector<1x1x1xf32>
    %276 = arith.mulf %273, %273 : vector<1x1x1xf32>
    %277 = arith.subf %275, %276 : vector<1x1x1xf32>
    %cst_72 = arith.constant 0.000000e+00 : f32
    %278 = vector.broadcast %cst_72 : f32 to vector<1x1x1xf32>
    %279 = arith.maximumf %277, %278 : vector<1x1x1xf32>
    %280 = vector.broadcast %273 : vector<1x1x1xf32> to vector<2x7x7xf32>
    %281 = arith.subf %256, %280 : vector<2x7x7xf32>
    %cst_73 = arith.constant 9.99999974E-6 : f32
    %282 = vector.broadcast %cst_73 : f32 to vector<1x1x1xf32>
    %283 = arith.addf %279, %282 : vector<1x1x1xf32>
    %284 = math.rsqrt %283 : vector<1x1x1xf32>
    %285 = vector.broadcast %284 : vector<1x1x1xf32> to vector<2x7x7xf32>
    %286 = arith.mulf %281, %285 : vector<2x7x7xf32>
    %287 = vector.broadcast %257 : f32 to vector<2x7x7xf32>
    %288 = arith.mulf %286, %287 : vector<2x7x7xf32>
    %289 = vector.broadcast %258 : f32 to vector<2x7x7xf32>
    %290 = arith.addf %288, %289 : vector<2x7x7xf32>
    %cst_74 = arith.constant 0.000000e+00 : f32
    %291 = vector.broadcast %cst_74 : f32 to vector<2x7x7xf32>
    %292 = arith.maximumf %290, %291 : vector<2x7x7xf32>
    %c2_75 = arith.constant 2 : index
    %c0_76 = arith.constant 0 : index
    %c0_77 = arith.constant 0 : index
    %c0_78 = arith.constant 0 : index
    %293 = vector.load %arg2[%c2_75, %c0_76, %c0_77, %c0_78] : memref<3x2x16x16xf32, #tpu.memory_space<vmem>>, vector<1x1x7x7xf32>
    %294 = vector.shape_cast %293 : vector<1x1x7x7xf32> to vector<7x7xf32>
    %295 = vector.shape_cast %294 : vector<7x7xf32> to vector<1x7x7xf32>
    %296 = vector.broadcast %295 : vector<1x7x7xf32> to vector<2x7x7xf32>
    %297 = arith.mulf %292, %296 : vector<2x7x7xf32>
    %cst_79 = arith.constant dense<0.000000e+00> : vector<2x7xf32>
    %298 = vector.multi_reduction <add>, %297, %cst_79 [2] : vector<2x7x7xf32> to vector<2x7xf32>
    %cst_80 = arith.constant dense<0.000000e+00> : vector<2xf32>
    %299 = vector.multi_reduction <add>, %298, %cst_80 [1] : vector<2x7xf32> to vector<2xf32>
    %300 = vector.shape_cast %299 : vector<2xf32> to vector<2x1xf32>
    %c22 = arith.constant 22 : index
    %301 = memref.load %arg0[%c22] : memref<23xf32, #tpu.memory_space<smem>>
    %302 = vector.broadcast %301 : f32 to vector<2x1xf32>
    %303 = arith.addf %300, %302 : vector<2x1xf32>
    %cst_81 = arith.constant 0.000000e+00 : f32
    %304 = vector.broadcast %cst_81 : f32 to vector<2x1xf32>
    %305 = arith.subf %304, %303 : vector<2x1xf32>
    %306 = math.exp %305 : vector<2x1xf32>
    %cst_82 = arith.constant 1.000000e+00 : f32
    %307 = vector.broadcast %cst_82 : f32 to vector<2x1xf32>
    %308 = arith.addf %307, %306 : vector<2x1xf32>
    %cst_83 = arith.constant 1.000000e+00 : f32
    %309 = vector.broadcast %cst_83 : f32 to vector<2x1xf32>
    %310 = arith.divf %309, %308 : vector<2x1xf32>
    %cst_84 = arith.constant 5.000000e+01 : f32
    %311 = vector.broadcast %cst_84 : f32 to vector<2x1xf32>
    %312 = arith.mulf %310, %311 : vector<2x1xf32>
    %cst_85 = arith.constant 1.000000e+01 : f32
    %313 = vector.broadcast %cst_85 : f32 to vector<2x1xf32>
    %314 = arith.addf %312, %313 : vector<2x1xf32>
    %c0_i32_86 = arith.constant 0 : i32
    %315 = vector.broadcast %c0_i32_86 : i32 to vector<2x256xi32>
    %316 = arith.cmpi eq, %6, %315 : vector<2x256xi32>
    %c1_i32_87 = arith.constant 1 : i32
    %317 = vector.broadcast %c1_i32_87 : i32 to vector<2x256xi32>
    %318 = arith.cmpi eq, %6, %317 : vector<2x256xi32>
    %c2_i32_88 = arith.constant 2 : i32
    %319 = vector.broadcast %c2_i32_88 : i32 to vector<2x256xi32>
    %320 = arith.cmpi eq, %6, %319 : vector<2x256xi32>
    %c3_i32 = arith.constant 3 : i32
    %321 = vector.broadcast %c3_i32 : i32 to vector<2x256xi32>
    %322 = arith.cmpi eq, %6, %321 : vector<2x256xi32>
    %cst_89 = arith.constant 0.000000e+00 : f32
    %323 = vector.shape_cast %314 : vector<2x1xf32> to vector<2x1xf32>
    %324 = vector.broadcast %323 : vector<2x1xf32> to vector<2x256xf32>
    %325 = vector.broadcast %cst_89 : f32 to vector<2x256xf32>
    %326 = arith.select %322, %324, %325 : vector<2x256xi1>, vector<2x256xf32>
    %327 = vector.shape_cast %72 : vector<2x1xf32> to vector<2x1xf32>
    %328 = vector.broadcast %327 : vector<2x1xf32> to vector<2x256xf32>
    %329 = arith.select %320, %328, %326 : vector<2x256xi1>, vector<2x256xf32>
    %330 = vector.shape_cast %80 : vector<2x1xf32> to vector<2x1xf32>
    %331 = vector.broadcast %330 : vector<2x1xf32> to vector<2x256xf32>
    %332 = arith.select %318, %331, %329 : vector<2x256xi1>, vector<2x256xf32>
    %333 = vector.shape_cast %55 : vector<2x1xf32> to vector<2x1xf32>
    %334 = vector.broadcast %333 : vector<2x1xf32> to vector<2x256xf32>
    %335 = arith.select %316, %334, %332 : vector<2x256xi1>, vector<2x256xf32>
    %c2_90 = arith.constant 2 : index
    %c0_91 = arith.constant 0 : index
    %c0_92 = arith.constant 0 : index
    %336 = vector.load %arg3[%c2_90, %c0_91, %c0_92] : memref<3x2x256xf32, #tpu.memory_space<vmem>>, vector<1x2x256xf32>
    %337 = vector.shape_cast %336 : vector<1x2x256xf32> to vector<2x256xf32>
    %338 = vector.shape_cast %335 : vector<2x256xf32> to vector<1x2x256xf32>
    tpu.vector_store %arg3[%c2_90, %c0_91, %c0_92], %338 {strides = array<i32>} : memref<3x2x256xf32, #tpu.memory_space<vmem>>, vector<1x2x256xf32>,
    return
  }
}

</mosaic_0001>

<llo_original>
// kernel: tpu_custom_call.1
$region0: #{tpu_custom_call.1}
  #allocation0 [shape = 'u32[]', space=smem, size = 0x4, offset = 0x4, fixed_abs, tag = 'smem constant byte address 0x4 - core index']
  #allocation1 [shape = 'u32[72,128]{1,0:T(1,128)}', space=vmem, size = 0x9000, scoped, tag = 'internal scratch']
  %s0 = inlined_call_operand.hbm [shape: f32[23], index: 0, kind: input, shape index: {}]
  %s1 = inlined_call_operand.hbm [shape: f32[3,2,256], index: 1, kind: input, shape index: {}]
  %s2 = inlined_call_operand.hbm [shape: f32[3,2,16,16], index: 2, kind: input, shape index: {}]
  %s3 = inlined_call_operand.hbm [shape: f32[3,2,256], index: 3, kind: output, shape index: {}]
  %s4 = sld [smem:[#allocation0]]
  $region34: #{tpu_custom_call.1} parent=0
    _
  %s6 = ssub.s32 1, %s4
  %s7 = scalar_select 0, %s6, %s4
  $region1: #{tpu_custom_call.1} parent=0
    #allocation2 [shape = 'u8[512]{0}', space=smem, size = 0x200, scoped, tag = 'input window, operand 0, single buffered']
    #allocation3 [shape = 's32[1]{0}', space=sflag, size = 0x4, scoped, tag = 'scoped memory for tpu_custom_call.1']
    #allocation4 [shape = 's32[1]{0}', space=sflag, size = 0x4, scoped, tag = 'scoped memory for tpu_custom_call.1']
    #allocation5 [shape = 's32[1]{0}', space=sflag, size = 0x4, scoped, tag = 'scoped memory for tpu_custom_call.1']
    #allocation6 [shape = 'u8[6144]{0}', space=vmem, size = 0x1800, scoped, tag = 'input window, operand 1, single buffered']
    #allocation7 [shape = 'u8[49152]{0}', space=vmem, size = 0xc000, scoped, tag = 'input window, operand 2, single buffered']
    #allocation8 [shape = 's32[1]{0}', space=sflag, size = 0x4, scoped, tag = 'scoped memory for tpu_custom_call.1']
    #allocation9 [shape = 'u8[6144]{0}', space=vmem, size = 0x1800, scoped, tag = 'output window, operand 0, single buffered']
    %8 = vsyncpa [#allocation5], 0
    %9 = vsyncpa [#allocation3], 0
    %10 = vsyncpa [#allocation8], 0
    %11 = vsyncpa [#allocation4], 0
    // Predicated region
    $region2: #{tpu_custom_call.1} parent=1 // pred_check
      _
    $region3: #{tpu_custom_call.1} parent=1 // pred_check_branch
      %13 = sbr.rel (0) target = $region5
    $region4: #{tpu_custom_call.1} parent=1 // pred_region
      %15 = vsyncadd [#allocation5], 0
      %s17 = sshll.u32 %s0, 4
      %s18 = int_to_ptr.hbm [resolvable:$true] %s17
      %20 = dma.hbm_to_smem %s18, 16, [#allocation2], [#allocation5]
    $region5: #{tpu_custom_call.1} parent=1 // pred_fallthru
      _
    // Predicated region
    $region6: #{tpu_custom_call.1} parent=1 // pred_check
      _
    $region7: #{tpu_custom_call.1} parent=1 // pred_check_branch
      %22 = sbr.rel (0) target = $region9
    $region8: #{tpu_custom_call.1} parent=1 // pred_region
      %24 = vsyncadd [#allocation3], 0
      %s25 = sshll.u32 %s1, 4
      %s26 = int_to_ptr.hbm [resolvable:$true] %s25
      %s27 = sshll.u32 [#allocation6], 4
      %s28 = int_to_ptr.vmem [resolvable:$true] %s27
      %33 = dma.hbm_to_vmem [thread:$0]  %s26, 192, %s28, [#allocation3], 64, 64, 4
    $region9: #{tpu_custom_call.1} parent=1 // pred_fallthru
      _
    // Predicated region
    $region10: #{tpu_custom_call.1} parent=1 // pred_check
      _
    $region11: #{tpu_custom_call.1} parent=1 // pred_check_branch
      %35 = sbr.rel (0) target = $region13
    $region12: #{tpu_custom_call.1} parent=1 // pred_region
      %37 = vsyncadd [#allocation8], 0
      %s38 = sshll.u32 %s2, 4
      %s39 = int_to_ptr.hbm [resolvable:$true] %s38
      %s40 = sshll.u32 [#allocation7], 4
      %s41 = int_to_ptr.vmem [resolvable:$true] %s40
      %46 = dma.hbm_to_vmem [thread:$0]  %s39, 1536, %s41, [#allocation8], 128, 128, 8
    $region13: #{tpu_custom_call.1} parent=1 // pred_fallthru
      _
    // Predicated region
    $region14: #{tpu_custom_call.1} parent=1 // pred_check
      _
    $region15: #{tpu_custom_call.1} parent=1 // pred_check_branch
      %48 = sbr.rel (0) target = $region17
    $region16: #{tpu_custom_call.1} parent=1 // pred_region
      %50 = dma.done [#allocation5], 16
    $region17: #{tpu_custom_call.1} parent=1 // pred_fallthru
      _
    // Predicated region
    $region18: #{tpu_custom_call.1} parent=1 // pred_check
      _
    $region19: #{tpu_custom_call.1} parent=1 // pred_check_branch
      %52 = sbr.rel (0) target = $region21
    $region20: #{tpu_custom_call.1} parent=1 // pred_region
      %54 = dma.done [#allocation3], 192
    $region21: #{tpu_custom_call.1} parent=1 // pred_fallthru
      _
    // Predicated region
    $region22: #{tpu_custom_call.1} parent=1 // pred_check
      _
    $region23: #{tpu_custom_call.1} parent=1 // pred_check_branch
      %56 = sbr.rel (0) target = $region25
    $region24: #{tpu_custom_call.1} parent=1 // pred_region
      %58 = dma.done [#allocation8], 1536
    $region25: #{tpu_custom_call.1} parent=1 // pred_fallthru
      _
    %59 = sfence
    %v60 = vld [vmem:[#allocation6] sm:$0xf]
    %s61 = scalar_lea.vmem [#allocation6], 4
    %v62 = vld [vmem:[%s61] sm:$0xf]
    %s63 = scalar_lea.vmem [#allocation6], 8
    %v64 = vld [vmem:[%s63] sm:$0xf]
    %v65 = vlaneseq
    %v66 = vand.u32 %v65, 127
    %v67 = vadd.s32 %v66, 128
    %vm68 = vcmp.lt.s32.totalorder %v66, 196
    %vm69 = vcmp.lt.s32.totalorder %v67, 196
    %v70 = vmul.f32 %v60, %v62
    %71 = vst [vmem:[#allocation9] sm:$0xf] %v70
    %73 = vst [vmem:[#allocation1] ss:$4 sm:$0xff] %v70
    %v74 = vld.sshfl [vmem:[#allocation1] sm:$0xff pattern:$0x73625140]
    %v75 = vld.sshfl [vmem:[#allocation1 + $0x8] sm:$0xff pattern:$0x73625140]
    %v78 = vsel %vm68, %v74, -1e+30
    %v79 = vsel %vm69, %v75, -1e+30
    %vm80 = vcmask 1041408
    %v81 = vsel %vm80, %v78, -inf
    %v82 = vsel %vm80, %v79, -inf
    %v83 = vmax.f32 %v81, %v82
    %84 = vmax.xlane.f32.xlu0 %v83
    %v85 = vpop.xlane.xlu0 %84
    %v86 = vsub.f32 %v78, %v85
    %v87 = vsub.f32 %v79, %v85
    %v88 = vmul.f32 %v86, 1.442695
    %v89 = vpow.pop %v88
    %v90 = vmul.f32 %v87, 1.442695
    %v91 = vpow.pop %v90
    %v92 = vsel %vm80, %v89, 0.0
    %v93 = vsel %vm80, %v91, 0.0
    %v94 = vadd.f32 %v92, %v93
    %95 = vadd.xlane.f32.xlu0 %v94
    %v96 = vpop.xlane.xlu0 %95
    %v97 = vrcp.pop %v96
    %v98 = vmul.f32 %v96, %v97
    %v99 = vsub.f32 1.0, %v98
    %v100 = vmul.f32 %v97, %v99
    %v101 = vadd.f32 %v97, %v100
    %vm102 = vweird.f32 %v96
    %vm103 = vweird.f32 %v97
    %vm104 = vmor %vm102, %vm103
    %v105 = vsel %vm104, %v97, %v101
    %v106 = vand.u32 2147483647, %v96
    %vm107 = vcmp.eq.f32.partialorder %v106, 8.507059e+37
    %v108 = vand.u32 %v96, 2147483648
    %v109 = vor.u32 1.1754944e-38, %v108
    %v110 = vsel %vm107, %v109, %v105
    %v111 = vmul.f32 %v89, %v110
    %v112 = vmul.f32 %v91, %v110
    %v115 = vrot.slane %v112, 6
    %v116 = vsel %vm80, %v111, %v115
    %s118 = scalar_lea.vmem [#allocation9], 4
    %119 = vst [vmem:[%s118] sm:$0xf] %v116
    %121 = vst [vmem:[#allocation1] ss:$4 sm:$0xff] %v64
    %v122 = vld.sshfl [vmem:[#allocation1] sm:$0xff pattern:$0x73625140]
    %v123 = vld.sshfl [vmem:[#allocation1 + $0x8] sm:$0xff pattern:$0x73625140]
    %v126 = vadd.f32 %v78, %v122
    %v127 = vadd.f32 %v79, %v123
    %v128 = vsel %vm80, %v126, -inf
    %v129 = vsel %vm80, %v127, -inf
    %v130 = vmax.f32 %v128, %v129
    %131 = vmax.xlane.f32.xlu0 %v130
    %v132 = vpop.xlane.xlu0 %131
    %vm133 = vcmp.ge.f32.partialorder %v126, %v132
    %vm134 = vcmp.ge.f32.partialorder %v127, %v132
    %v135 = vsel %vm133, %v66, 196
    %v136 = vsel %vm134, %v67, 196
    %v137 = vsel %vm80, %v135, 2147483647
    %v138 = vsel %vm80, %v136, 2147483647
    %vm139 = vcmp.lt.s32.totalorder %v137, %v138
    %v140 = vsel %vm139, %v137, %v138
    %v141 = vand.u32 %v140, 65535
    %v142 = vshra.s32 %v140, 16
    %v143 = vcvt.s32.f32 %v141
    %v144 = vcvt.s32.f32 %v142
    %145 = vmin.xlane.f32.xlu0 %v144
    %v146 = vpop.xlane.xlu0 %145
    %vm147 = vcmp.eq.f32.partialorder %v144, %v146
    %v148 = vsel %vm147, %v143, inf
    %149 = vmin.xlane.f32.xlu0 %v148
    %v150 = vpop.xlane.xlu0 %149
    %v151 = vcvt.f32.s32 %v150
    %v152 = vcvt.f32.s32 %v146
    %v153 = vshll.u32 %v152, 16
    %v154 = vadd.s32 %v153, %v151
    %156 = vst [vmem:[#allocation1] ss:$4 sm:$0xff] %v60
    %v157 = vld.sshfl [vmem:[#allocation1] sm:$0xff pattern:$0x73625140]
    %v158 = vld.sshfl [vmem:[#allocation1 + $0x8] sm:$0xff pattern:$0x73625140]
    %v161 = vsel %vm68, %v157, -1e+30
    %v162 = vsel %vm69, %v158, -1e+30
    %v163 = vsel %vm80, %v161, -inf
    %v164 = vsel %vm80, %v162, -inf
    %v165 = vmax.f32 %v163, %v164
    %166 = vmax.xlane.f32.xlu0 %v165
    %v167 = vpop.xlane.xlu0 %166
    %v168 = vsub.f32 %v161, %v167
    %v169 = vsub.f32 %v162, %v167
    %v170 = vmul.f32 %v168, 1.442695
    %v171 = vpow.pop %v170
    %v172 = vmul.f32 %v169, 1.442695
    %v173 = vpow.pop %v172
    %v174 = vsel %vm80, %v171, 0.0
    %v175 = vsel %vm80, %v173, 0.0
    %v176 = vadd.f32 %v174, %v175
    %177 = vadd.xlane.f32.xlu0 %v176
    %v178 = vpop.xlane.xlu0 %177
    %v179 = vlog2.pop %v178
    %v180 = vmul.f32 %v179, 0.6931472
    %v181 = vsub.f32 %v168, %v180
    %v182 = vsub.f32 %v169, %v180
    %vm183 = vcmp.eq.s32.totalorder %v66, %v154
    %vm184 = vcmp.eq.s32.totalorder %v67, %v154
    %v185 = vsel %vm183, %v181, 0.0
    %v186 = vsel %vm184, %v182, 0.0
    %v187 = vsel %vm80, %v185, 0.0
    %v188 = vsel %vm80, %v186, 0.0
    %v189 = vadd.f32 %v187, %v188
    %190 = vadd.xlane.f32.xlu0 %v189
    %v191 = vpop.xlane.xlu0 %190
    %v192 = vcvt.s32.f32 %v154
    %v193 = vadd.f32 %v192, 0.5
    %v194 = vrcp.pop 14.0
    %v195 = vmul.f32 14.0, %v194
    %v196 = vsub.f32 1.0, %v195
    %v197 = vmul.f32 %v194, %v196
    %v198 = vadd.f32 %v194, %v197
    %vm199 = vweird.f32 %v194
    %v200 = vsel %vm199, %v194, %v198
    %v201 = vmul.f32 %v193, %v200
    %v202 = vfloor.f32 %v201
    %v203 = vmul.f32 %v202, 14.0
    %v204 = vsub.f32 %v192, %v203
    %v205 = vmul.f32 %v202, %v200
    %v206 = vsub.f32 %v205, 0.5
    %v207 = vmul.f32 %v206, 2.0
    %v208 = vmul.f32 %v207, 0.95
    %v209 = vmul.f32 %v204, %v200
    %v210 = vsub.f32 %v209, 0.5
    %v211 = vmul.f32 %v210, 2.0
    %v212 = vmul.f32 %v211, 0.95
    %v213 = vld [vmem:[#allocation7] sm:$0xff]
    %v214 = vld [vmem:[#allocation7 + $0x8] sm:$0xff]
    %v215 = vld [vmem:[#allocation7 + $0x10] sm:$0xff]
    %v216 = vld [vmem:[#allocation7 + $0x18] sm:$0xff]
    %s217 = scalar_lea.vmem [#allocation7], 32
    %v218 = vld [vmem:[%s217] sm:$0xff]
    %v219 = vld [vmem:[%s217 + $0x8] sm:$0xff]
    %v220 = vld [vmem:[%s217 + $0x10] sm:$0xff]
    %v221 = vld [vmem:[%s217 + $0x18] sm:$0xff]
    %v222 = vmul.f32 %v213, %v218
    %v223 = vmul.f32 %v214, %v219
    %v224 = vmul.f32 %v215, %v220
    %v225 = vmul.f32 %v216, %v221
    %s226 = sld [smem:[#allocation2]]
    %v227 = vstv %s226
    %v228 = vmul.f32 %v227, %v222
    %v229 = vmul.f32 %v227, %v223
    %v230 = vmul.f32 %v227, %v224
    %v231 = vmul.f32 %v227, %v225
    %s232 = sld [smem:[#allocation2 + $0x1]]
    %v233 = vstv %s232
    %v234 = vmul.f32 %v233, %v222
    %v235 = vmul.f32 %v233, %v223
    %v236 = vmul.f32 %v233, %v224
    %v237 = vmul.f32 %v233, %v225
    %242 = vrot.lane.b32.xlu0 %v234, 127
    %v243 = vpop.permute.xlu0 %242
    %244 = vrot.lane.b32.xlu0 %v235, 127
    %v245 = vpop.permute.xlu0 %244
    %246 = vrot.lane.b32.xlu0 %v236, 127
    %v247 = vpop.permute.xlu0 %246
    %248 = vrot.lane.b32.xlu0 %v237, 127
    %v249 = vpop.permute.xlu0 %248
    %v254 = vadd.f32 %v228, %v243
    %v255 = vadd.f32 %v229, %v245
    %v256 = vadd.f32 %v230, %v247
    %v257 = vadd.f32 %v231, %v249
    %s258 = sld [smem:[#allocation2 + $0x2]]
    %v259 = vstv %s258
    %v260 = vmul.f32 %v259, %v222
    %v261 = vmul.f32 %v259, %v223
    %v262 = vmul.f32 %v259, %v224
    %v263 = vmul.f32 %v259, %v225
    %268 = vrot.lane.b32.xlu0 %v260, 126
    %v269 = vpop.permute.xlu0 %268
    %270 = vrot.lane.b32.xlu0 %v261, 126
    %v271 = vpop.permute.xlu0 %270
    %272 = vrot.lane.b32.xlu0 %v262, 126
    %v273 = vpop.permute.xlu0 %272
    %274 = vrot.lane.b32.xlu0 %v263, 126
    %v275 = vpop.permute.xlu0 %274
    %v280 = vadd.f32 %v254, %v269
    %v281 = vadd.f32 %v255, %v271
    %v282 = vadd.f32 %v256, %v273
    %v283 = vadd.f32 %v257, %v275
    %s284 = sld [smem:[#allocation2 + $0x3]]
    %v285 = vstv %s284
    %v286 = vmul.f32 %v285, %v222
    %v287 = vmul.f32 %v285, %v223
    %v288 = vmul.f32 %v285, %v224
    %v289 = vmul.f32 %v285, %v225
    %vm294 = vcmask 1046528
    %v295 = vrot.slane %v286, 1
    %v296 = vrot.slane %v287, 1
    %v297 = vsel %vm294, %v295, %v296
    %v298 = vrot.slane %v288, 1
    %v299 = vrot.slane %v289, 1
    %v300 = vsel %vm294, %v298, %v299
    %v305 = vadd.f32 %v280, %v297
    %v306 = vadd.f32 %v281, %v296
    %v307 = vadd.f32 %v282, %v300
    %v308 = vadd.f32 %v283, %v299
    %s309 = sld [smem:[#allocation2 + $0x4]]
    %v310 = vstv %s309
    %v311 = vmul.f32 %v310, %v222
    %v312 = vmul.f32 %v310, %v223
    %v313 = vmul.f32 %v310, %v224
    %v314 = vmul.f32 %v310, %v225
    %v319 = vrot.slane %v311, 1
    %v320 = vrot.slane %v312, 1
    %v321 = vsel %vm294, %v319, %v320
    %v322 = vrot.slane %v313, 1
    %v323 = vrot.slane %v314, 1
    %v324 = vsel %vm294, %v322, %v323
    %325 = vrot.lane.b32.xlu0 %v321, 127
    %v326 = vpop.permute.xlu0 %325
    %327 = vrot.lane.b32.xlu0 %v320, 127
    %v328 = vpop.permute.xlu0 %327
    %329 = vrot.lane.b32.xlu0 %v324, 127
    %v330 = vpop.permute.xlu0 %329
    %331 = vrot.lane.b32.xlu0 %v323, 127
    %v332 = vpop.permute.xlu0 %331
    %v337 = vadd.f32 %v305, %v326
    %v338 = vadd.f32 %v306, %v328
    %v339 = vadd.f32 %v307, %v330
    %v340 = vadd.f32 %v308, %v332
    %s341 = sld [smem:[#allocation2 + $0x5]]
    %v342 = vstv %s341
    %v343 = vmul.f32 %v342, %v222
    %v344 = vmul.f32 %v342, %v223
    %v345 = vmul.f32 %v342, %v224
    %v346 = vmul.f32 %v342, %v225
    %v351 = vrot.slane %v343, 1
    %v352 = vrot.slane %v344, 1
    %v353 = vsel %vm294, %v351, %v352
    %v354 = vrot.slane %v345, 1
    %v355 = vrot.slane %v346, 1
    %v356 = vsel %vm294, %v354, %v355
    %357 = vrot.lane.b32.xlu0 %v353, 126
    %v358 = vpop.permute.xlu0 %357
    %359 = vrot.lane.b32.xlu0 %v352, 126
    %v360 = vpop.permute.xlu0 %359
    %361 = vrot.lane.b32.xlu0 %v356, 126
    %v362 = vpop.permute.xlu0 %361
    %363 = vrot.lane.b32.xlu0 %v355, 126
    %v364 = vpop.permute.xlu0 %363
    %v369 = vadd.f32 %v337, %v358
    %v370 = vadd.f32 %v338, %v360
    %v371 = vadd.f32 %v339, %v362
    %v372 = vadd.f32 %v340, %v364
    %s373 = sld [smem:[#allocation2 + $0x6]]
    %v374 = vstv %s373
    %v375 = vmul.f32 %v374, %v222
    %v376 = vmul.f32 %v374, %v223
    %v377 = vmul.f32 %v374, %v224
    %v378 = vmul.f32 %v374, %v225
    %vm383 = vcmask 1045504
    %v384 = vrot.slane %v375, 2
    %v385 = vrot.slane %v376, 2
    %v386 = vsel %vm383, %v384, %v385
    %v387 = vrot.slane %v377, 2
    %v388 = vrot.slane %v378, 2
    %v389 = vsel %vm383, %v387, %v388
    %v394 = vadd.f32 %v369, %v386
    %v395 = vadd.f32 %v370, %v385
    %v396 = vadd.f32 %v371, %v389
    %v397 = vadd.f32 %v372, %v388
    %s398 = sld [smem:[#allocation2 + $0x7]]
    %v399 = vstv %s398
    %v400 = vmul.f32 %v399, %v222
    %v401 = vmul.f32 %v399, %v223
    %v402 = vmul.f32 %v399, %v224
    %v403 = vmul.f32 %v399, %v225
    %v408 = vrot.slane %v400, 2
    %v409 = vrot.slane %v401, 2
    %v410 = vsel %vm383, %v408, %v409
    %v411 = vrot.slane %v402, 2
    %v412 = vrot.slane %v403, 2
    %v413 = vsel %vm383, %v411, %v412
    %414 = vrot.lane.b32.xlu0 %v410, 127
    %v415 = vpop.permute.xlu0 %414
    %416 = vrot.lane.b32.xlu0 %v409, 127
    %v417 = vpop.permute.xlu0 %416
    %418 = vrot.lane.b32.xlu0 %v413, 127
    %v419 = vpop.permute.xlu0 %418
    %420 = vrot.lane.b32.xlu0 %v412, 127
    %v421 = vpop.permute.xlu0 %420
    %v426 = vadd.f32 %v394, %v415
    %v427 = vadd.f32 %v395, %v417
    %v428 = vadd.f32 %v396, %v419
    %v429 = vadd.f32 %v397, %v421
    %s430 = sld [smem:[#allocation2 + $0x8]]
    %v431 = vstv %s430
    %v432 = vmul.f32 %v431, %v222
    %v433 = vmul.f32 %v431, %v223
    %v434 = vmul.f32 %v431, %v224
    %v435 = vmul.f32 %v431, %v225
    %v440 = vrot.slane %v432, 2
    %v441 = vrot.slane %v433, 2
    %v442 = vsel %vm383, %v440, %v441
    %v443 = vrot.slane %v434, 2
    %v444 = vrot.slane %v435, 2
    %v445 = vsel %vm383, %v443, %v444
    %446 = vrot.lane.b32.xlu0 %v442, 126
    %v447 = vpop.permute.xlu0 %446
    %448 = vrot.lane.b32.xlu0 %v441, 126
    %v449 = vpop.permute.xlu0 %448
    %450 = vrot.lane.b32.xlu0 %v445, 126
    %v451 = vpop.permute.xlu0 %450
    %452 = vrot.lane.b32.xlu0 %v444, 126
    %v453 = vpop.permute.xlu0 %452
    %v458 = vadd.f32 %v426, %v447
    %v459 = vadd.f32 %v427, %v449
    %v460 = vadd.f32 %v428, %v451
    %v461 = vadd.f32 %v429, %v453
    %s462 = sld [smem:[#allocation2 + $0x9]]
    %s463 = sld [smem:[#allocation2 + $0xa]]
    %vm464 = vcmask 113664
    %v465 = vsel %vm464, %v458, 0.0
    %466 = vadd.xlane.f32.xlu0 %v465
    %v467 = vpop.xlane.xlu0 %466
    %vm468 = vcmask 111616
    %v469 = vsel %vm468, %v459, 0.0
    %470 = vadd.xlane.f32.xlu0 %v469
    %v471 = vpop.xlane.xlu0 %470
    %v472 = vsel %vm464, %v460, 0.0
    %473 = vadd.xlane.f32.xlu0 %v472
    %v474 = vpop.xlane.xlu0 %473
    %v475 = vsel %vm468, %v461, 0.0
    %476 = vadd.xlane.f32.xlu0 %v475
    %v477 = vpop.xlane.xlu0 %476
    %v478 = vsel %vm383, %v471, 0.0
    %v479 = vadd.f32 %v467, %v478
    %v480 = vrot.slane %v479, 4
    %v481 = vadd.f32 %v479, %v480
    %v482 = vrot.slane %v481, 2
    %v483 = vadd.f32 %v481, %v482
    %v484 = vrot.slane %v483, 1
    %v485 = vadd.f32 %v483, %v484
    %v486 = vsel %vm383, %v477, 0.0
    %v487 = vadd.f32 %v474, %v486
    %v488 = vrot.slane %v487, 4
    %v489 = vadd.f32 %v487, %v488
    %v490 = vrot.slane %v489, 2
    %v491 = vadd.f32 %v489, %v490
    %v492 = vrot.slane %v491, 1
    %v493 = vadd.f32 %v491, %v492
    %v494 = vadd.f32 %v485, %v493
    %v495 = vmul.f32 %v458, %v458
    %v496 = vmul.f32 %v459, %v459
    %v497 = vmul.f32 %v460, %v460
    %v498 = vmul.f32 %v461, %v461
    %v499 = vsel %vm464, %v495, 0.0
    %500 = vadd.xlane.f32.xlu0 %v499
    %v501 = vpop.xlane.xlu0 %500
    %v502 = vsel %vm468, %v496, 0.0
    %503 = vadd.xlane.f32.xlu0 %v502
    %v504 = vpop.xlane.xlu0 %503
    %v505 = vsel %vm464, %v497, 0.0
    %506 = vadd.xlane.f32.xlu0 %v505
    %v507 = vpop.xlane.xlu0 %506
    %v508 = vsel %vm468, %v498, 0.0
    %509 = vadd.xlane.f32.xlu0 %v508
    %v510 = vpop.xlane.xlu0 %509
    %v511 = vsel %vm383, %v504, 0.0
    %v512 = vadd.f32 %v501, %v511
    %v513 = vrot.slane %v512, 4
    %v514 = vadd.f32 %v512, %v513
    %v515 = vrot.slane %v514, 2
    %v516 = vadd.f32 %v514, %v515
    %v517 = vrot.slane %v516, 1
    %v518 = vadd.f32 %v516, %v517
    %v519 = vsel %vm383, %v510, 0.0
    %v520 = vadd.f32 %v507, %v519
    %v521 = vrot.slane %v520, 4
    %v522 = vadd.f32 %v520, %v521
    %v523 = vrot.slane %v522, 2
    %v524 = vadd.f32 %v522, %v523
    %v525 = vrot.slane %v524, 1
    %v526 = vadd.f32 %v524, %v525
    %v527 = vadd.f32 %v518, %v526
    %v528 = vrcp.pop 392.0
    %v529 = vmul.f32 392.0, %v528
    %v530 = vsub.f32 1.0, %v529
    %v531 = vmul.f32 %v528, %v530
    %v532 = vadd.f32 %v528, %v531
    %vm533 = vweird.f32 %v528
    %v534 = vsel %vm533, %v528, %v532
    %v535 = vmul.f32 %v494, %v534
    %v536 = vmul.f32 %v527, %v534
    %v537 = vmul.f32 %v535, %v535
    %v538 = vsub.f32 %v536, %v537
    %v539 = vmax.f32 %v538, 0.0
    %v540 = vsub.f32 %v458, %v535
    %v541 = vsub.f32 %v459, %v535
    %v542 = vsub.f32 %v460, %v535
    %v543 = vsub.f32 %v461, %v535
    %v544 = vadd.f32 %v539, 1e-05
    %v545 = vrsqrt.pop %v544
    %v546 = vmul.f32 %v545, %v544
    %v547 = vmul.f32 %v546, %v545
    %v548 = vmul.f32 0.5, %v547
    %v549 = vsub.f32 1.5, %v548
    %v550 = vmul.f32 %v545, %v549
    %vm551 = vweird.f32 %v544
    %vm552 = vweird.f32 %v545
    %vm553 = vmor %vm551, %vm552
    %v554 = vsel %vm553, %v545, %v550
    %v555 = vmul.f32 %v540, %v554
    %v556 = vmul.f32 %v541, %v554
    %v557 = vmul.f32 %v542, %v554
    %v558 = vmul.f32 %v543, %v554
    %v559 = vstv %s462
    %v560 = vmul.f32 %v555, %v559
    %v561 = vmul.f32 %v556, %v559
    %v562 = vmul.f32 %v557, %v559
    %v563 = vmul.f32 %v558, %v559
    %v564 = vstv %s463
    %v565 = vadd.f32 %v560, %v564
    %v566 = vadd.f32 %v561, %v564
    %v567 = vadd.f32 %v562, %v564
    %v568 = vadd.f32 %v563, %v564
    %v569 = vmax.f32 %v565, 0.0
    %v570 = vmax.f32 %v566, 0.0
    %v571 = vmax.f32 %v567, 0.0
    %v572 = vmax.f32 %v568, 0.0
    %v577 = vrot.slane %v569, 1
    %v578 = vrot.slane %v570, 1
    %v579 = vsel %vm294, %v577, %v578
    %v580 = vrot.slane %v571, 1
    %v581 = vrot.slane %v572, 1
    %v582 = vsel %vm294, %v580, %v581
    %v587 = vmax.f32 %v569, %v579
    %v588 = vmax.f32 %v570, %v578
    %v589 = vmax.f32 %v571, %v582
    %v590 = vmax.f32 %v572, %v581
    %595 = vrot.lane.b32.xlu0 %v587, 127
    %v596 = vpop.permute.xlu0 %595
    %597 = vrot.lane.b32.xlu0 %v588, 127
    %v598 = vpop.permute.xlu0 %597
    %599 = vrot.lane.b32.xlu0 %v589, 127
    %v600 = vpop.permute.xlu0 %599
    %601 = vrot.lane.b32.xlu0 %v590, 127
    %v602 = vpop.permute.xlu0 %601
    %v607 = vmax.f32 %v587, %v596
    %v608 = vmax.f32 %v588, %v598
    %v609 = vmax.f32 %v589, %v600
    %v610 = vmax.f32 %v590, %v602
    %v611 = vlaneseq
    %v612 = vshrl.u32 %v611, 7
    %v613 = vadd.s32 %v612, 8
    %v614 = vsub.s32 %v66, 1
    %vm615 = vcmp.lt.s32.totalorder %v614, 0
    %v616 = vsub.s32 0, %v614
    %vm617 = vcmp.gt.s32.totalorder %v614, 6
    %v618 = vsub.s32 12, %v614
    %v619 = vsel %vm617, %v618, %v614
    %v620 = vsel %vm615, %v616, %v619
    %v621 = vmul.u32 %v620, 2
    %vm622 = vcmp.eq.s32.totalorder %v612, %v621
    %vm623 = vcmp.eq.s32.totalorder %v613, %v621
    %v624 = vsel %vm622, 1, 0
    %v625 = vsel %vm623, 1, 0
    %v626 = vcvt.s32.f32 %v624
    %v627 = vcvt.s32.f32 %v625
    %vm628 = vcmask 105472
    %v630 = vsel %vm628, %v607, 0
    %v633 = vsel %vm628, %v608, 0
    %vm635 = vcmask 1044480
    %v637 = vsel %vm635, %v627, 0
    %639 = vmatpush.msra.mxu0 0.0
    %640 = vmatpush.msra.mxu0 0.0
    %641 = vmatpush.msra.mxu0 0.0
    %642 = vmatpush.msra.mxu0 0.0
    %643 = vmatpush.msra.mxu0 0.0
    %644 = vmatpush.msra.mxu0 0.0
    %645 = vmatpush.msra.mxu0 0.0
    %646 = vmatpush.msra.mxu0 0.0
    %647 = vmatpush.msra.mxu0 0.0
    %648 = vmatpush.msra.mxu0 0.0
    %649 = vmatpush.msra.mxu0 0.0
    %650 = vmatpush.msra.mxu0 0.0
    %651 = vmatpush.msra.mxu0 0.0
    %652 = vmatpush.msra.mxu0 0.0
    %653 = vmatpush.msra.mxu0 %v637
    %654 = vmatpush.msra.mxu0 %v626
    %655 = vmatmul.f32.gmra.mxu0 %v630
    %v656 = vpop.f32.mrf.mxu0
    %v657 = vadd.f32 0.0, %v656
    %658 = vmatmul.f32.gmra.mxu0 %v633
    %v659 = vpop.f32.mrf.mxu0
    %v660 = vadd.f32 0.0, %v659
    %661 = vdwg.mxu0
    %v663 = vsel %vm628, %v609, 0
    %v666 = vsel %vm628, %v610, 0
    %668 = vmatpush.msra.mxu0 0.0
    %669 = vmatpush.msra.mxu0 0.0
    %670 = vmatpush.msra.mxu0 0.0
    %671 = vmatpush.msra.mxu0 0.0
    %672 = vmatpush.msra.mxu0 0.0
    %673 = vmatpush.msra.mxu0 0.0
    %674 = vmatpush.msra.mxu0 0.0
    %675 = vmatpush.msra.mxu0 0.0
    %676 = vmatpush.msra.mxu0 0.0
    %677 = vmatpush.msra.mxu0 0.0
    %678 = vmatpush.msra.mxu0 0.0
    %679 = vmatpush.msra.mxu0 0.0
    %680 = vmatpush.msra.mxu0 0.0
    %681 = vmatpush.msra.mxu0 0.0
    %682 = vmatpush.msra.mxu0 %v637
    %683 = vmatpush.msra.mxu0 %v626
    %684 = vmatmul.f32.gmra.mxu0 %v663
    %v685 = vpop.f32.mrf.mxu0
    %v686 = vadd.f32 0.0, %v685
    %687 = vmatmul.f32.gmra.mxu0 %v666
    %v688 = vpop.f32.mrf.mxu0
    %v689 = vadd.f32 0.0, %v688
    %690 = vdwg.mxu0
    %v691 = vsub.s32 %v612, 1
    %v692 = vsub.s32 %v613, 1
    %vm693 = vcmp.lt.s32.totalorder %v691, 0
    %vm694 = vcmp.lt.s32.totalorder %v692, 0
    %v695 = vsub.s32 0, %v691
    %v696 = vsub.s32 0, %v692
    %vm697 = vcmp.gt.s32.totalorder %v691, 6
    %vm698 = vcmp.gt.s32.totalorder %v692, 6
    %v699 = vsub.s32 12, %v691
    %v700 = vsub.s32 12, %v692
    %v701 = vsel %vm697, %v699, %v691
    %v702 = vsel %vm698, %v700, %v692
    %v703 = vsel %vm693, %v695, %v701
    %v704 = vsel %vm694, %v696, %v702
    %v705 = vmul.u32 %v703, 2
    %v706 = vmul.u32 %v704, 2
    %vm707 = vcmp.eq.s32.totalorder %v66, %v705
    %vm708 = vcmp.eq.s32.totalorder %v66, %v706
    %v709 = vsel %vm707, 1, 0
    %v710 = vsel %vm708, 1, 0
    %v711 = vcvt.s32.f32 %v709
    %v712 = vcvt.s32.f32 %v710
    %v714 = vsel %vm628, %v711, 0
    %v717 = vsel %vm628, %v712, 0
    %v720 = vsel %vm635, %v660, 0
    %722 = vmatpush.msra.mxu0 0.0
    %723 = vmatpush.msra.mxu0 0.0
    %724 = vmatpush.msra.mxu0 0.0
    %725 = vmatpush.msra.mxu0 0.0
    %726 = vmatpush.msra.mxu0 0.0
    %727 = vmatpush.msra.mxu0 0.0
    %728 = vmatpush.msra.mxu0 0.0
    %729 = vmatpush.msra.mxu0 0.0
    %730 = vmatpush.msra.mxu0 0.0
    %731 = vmatpush.msra.mxu0 0.0
    %732 = vmatpush.msra.mxu0 0.0
    %733 = vmatpush.msra.mxu0 0.0
    %734 = vmatpush.msra.mxu0 0.0
    %735 = vmatpush.msra.mxu0 0.0
    %736 = vmatpush.msra.mxu0 %v720
    %737 = vmatpush.msra.mxu0 %v657
    %738 = vmatmul.f32.gmra.mxu0 %v714
    %v739 = vpop.f32.mrf.mxu0
    %v740 = vadd.f32 0.0, %v739
    %741 = vmatmul.f32.gmra.mxu0 %v717
    %v742 = vpop.f32.mrf.mxu0
    %v743 = vadd.f32 0.0, %v742
    %744 = vdwg.mxu0
    %v746 = vsel %vm635, %v689, 0
    %748 = vmatpush.msra.mxu0 0.0
    %749 = vmatpush.msra.mxu0 0.0
    %750 = vmatpush.msra.mxu0 0.0
    %751 = vmatpush.msra.mxu0 0.0
    %752 = vmatpush.msra.mxu0 0.0
    %753 = vmatpush.msra.mxu0 0.0
    %754 = vmatpush.msra.mxu0 0.0
    %755 = vmatpush.msra.mxu0 0.0
    %756 = vmatpush.msra.mxu0 0.0
    %757 = vmatpush.msra.mxu0 0.0
    %758 = vmatpush.msra.mxu0 0.0
    %759 = vmatpush.msra.mxu0 0.0
    %760 = vmatpush.msra.mxu0 0.0
    %761 = vmatpush.msra.mxu0 0.0
    %762 = vmatpush.msra.mxu0 %v746
    %763 = vmatpush.msra.mxu0 %v686
    %764 = vmatmul.f32.gmra.mxu0 %v714
    %v765 = vpop.f32.mrf.mxu0
    %v766 = vadd.f32 0.0, %v765
    %767 = vmatmul.f32.gmra.mxu0 %v717
    %v768 = vpop.f32.mrf.mxu0
    %v769 = vadd.f32 0.0, %v768
    %770 = vdwg.mxu0
    %s771 = sld [smem:[#allocation2 + $0xb]]
    %v772 = vstv %s771
    %v773 = vmul.f32 %v772, %v740
    %v774 = vmul.f32 %v772, %v766
    %s775 = sld [smem:[#allocation2 + $0xc]]
    %v776 = vstv %s775
    %v777 = vmul.f32 %v776, %v740
    %v778 = vmul.f32 %v776, %v766
    %781 = vrot.lane.b32.xlu0 %v777, 127
    %v782 = vpop.permute.xlu0 %781
    %783 = vrot.lane.b32.xlu0 %v778, 127
    %v784 = vpop.permute.xlu0 %783
    %v787 = vadd.f32 %v773, %v782
    %v788 = vadd.f32 %v774, %v784
    %s789 = sld [smem:[#allocation2 + $0xd]]
    %v790 = vstv %s789
    %v791 = vmul.f32 %v790, %v740
    %v792 = vmul.f32 %v790, %v766
    %795 = vrot.lane.b32.xlu0 %v791, 126
    %v796 = vpop.permute.xlu0 %795
    %797 = vrot.lane.b32.xlu0 %v792, 126
    %v798 = vpop.permute.xlu0 %797
    %v801 = vadd.f32 %v787, %v796
    %v802 = vadd.f32 %v788, %v798
    %s803 = sld [smem:[#allocation2 + $0xe]]
    %v804 = vstv %s803
    %v805 = vmul.f32 %v804, %v740
    %v806 = vmul.f32 %v804, %v766
    %v809 = vrot.slane %v805, 1
    %v810 = vrot.slane %v806, 1
    %v813 = vadd.f32 %v801, %v809
    %v814 = vadd.f32 %v802, %v810
    %s815 = sld [smem:[#allocation2 + $0xf]]
    %v816 = vstv %s815
    %v817 = vmul.f32 %v816, %v740
    %v818 = vmul.f32 %v816, %v766
    %v821 = vrot.slane %v817, 1
    %v822 = vrot.slane %v818, 1
    %823 = vrot.lane.b32.xlu0 %v821, 127
    %v824 = vpop.permute.xlu0 %823
    %825 = vrot.lane.b32.xlu0 %v822, 127
    %v826 = vpop.permute.xlu0 %825
    %v829 = vadd.f32 %v813, %v824
    %v830 = vadd.f32 %v814, %v826
    %s831 = sld [smem:[#allocation2 + $0x10]]
    %v832 = vstv %s831
    %v833 = vmul.f32 %v832, %v740
    %v834 = vmul.f32 %v832, %v766
    %v837 = vrot.slane %v833, 1
    %v838 = vrot.slane %v834, 1
    %839 = vrot.lane.b32.xlu0 %v837, 126
    %v840 = vpop.permute.xlu0 %839
    %841 = vrot.lane.b32.xlu0 %v838, 126
    %v842 = vpop.permute.xlu0 %841
    %v845 = vadd.f32 %v829, %v840
    %v846 = vadd.f32 %v830, %v842
    %s847 = sld [smem:[#allocation2 + $0x11]]
    %v848 = vstv %s847
    %v849 = vmul.f32 %v848, %v740
    %v850 = vmul.f32 %v848, %v743
    %v851 = vmul.f32 %v848, %v766
    %v852 = vmul.f32 %v848, %v769
    %v857 = vrot.slane %v849, 2
    %v858 = vrot.slane %v850, 2
    %v859 = vsel %vm383, %v857, %v858
    %v860 = vrot.slane %v851, 2
    %v861 = vrot.slane %v852, 2
    %v862 = vsel %vm383, %v860, %v861
    %v865 = vadd.f32 %v845, %v859
    %v866 = vadd.f32 %v846, %v862
    %s867 = sld [smem:[#allocation2 + $0x12]]
    %v868 = vstv %s867
    %v869 = vmul.f32 %v868, %v740
    %v870 = vmul.f32 %v868, %v743
    %v871 = vmul.f32 %v868, %v766
    %v872 = vmul.f32 %v868, %v769
    %v877 = vrot.slane %v869, 2
    %v878 = vrot.slane %v870, 2
    %v879 = vsel %vm383, %v877, %v878
    %v880 = vrot.slane %v871, 2
    %v881 = vrot.slane %v872, 2
    %v882 = vsel %vm383, %v880, %v881
    %883 = vrot.lane.b32.xlu0 %v879, 127
    %v884 = vpop.permute.xlu0 %883
    %885 = vrot.lane.b32.xlu0 %v882, 127
    %v886 = vpop.permute.xlu0 %885
    %v889 = vadd.f32 %v865, %v884
    %v890 = vadd.f32 %v866, %v886
    %s891 = sld [smem:[#allocation2 + $0x13]]
    %v892 = vstv %s891
    %v893 = vmul.f32 %v892, %v740
    %v894 = vmul.f32 %v892, %v743
    %v895 = vmul.f32 %v892, %v766
    %v896 = vmul.f32 %v892, %v769
    %v901 = vrot.slane %v893, 2
    %v902 = vrot.slane %v894, 2
    %v903 = vsel %vm383, %v901, %v902
    %v904 = vrot.slane %v895, 2
    %v905 = vrot.slane %v896, 2
    %v906 = vsel %vm383, %v904, %v905
    %907 = vrot.lane.b32.xlu0 %v903, 126
    %v908 = vpop.permute.xlu0 %907
    %909 = vrot.lane.b32.xlu0 %v906, 126
    %v910 = vpop.permute.xlu0 %909
    %v913 = vadd.f32 %v889, %v908
    %v914 = vadd.f32 %v890, %v910
    %s915 = sld [smem:[#allocation2 + $0x14]]
    %s916 = sld [smem:[#allocation2 + $0x15]]
    %vm917 = vcmask 55296
    %v918 = vsel %vm917, %v913, 0.0
    %919 = vadd.xlane.f32.xlu0 %v918
    %v920 = vpop.xlane.xlu0 %919
    %v921 = vsel %vm917, %v914, 0.0
    %922 = vadd.xlane.f32.xlu0 %v921
    %v923 = vpop.xlane.xlu0 %922
    %v924 = vsel %vm294, %v920, 0.0
    %v925 = vrot.slane %v924, 4
    %v926 = vadd.f32 %v924, %v925
    %v927 = vrot.slane %v926, 2
    %v928 = vadd.f32 %v926, %v927
    %v929 = vrot.slane %v928, 1
    %v930 = vadd.f32 %v928, %v929
    %v931 = vsel %vm294, %v923, 0.0
    %v932 = vrot.slane %v931, 4
    %v933 = vadd.f32 %v931, %v932
    %v934 = vrot.slane %v933, 2
    %v935 = vadd.f32 %v933, %v934
    %v936 = vrot.slane %v935, 1
    %v937 = vadd.f32 %v935, %v936
    %v938 = vadd.f32 %v930, %v937
    %v939 = vmul.f32 %v913, %v913
    %v940 = vmul.f32 %v914, %v914
    %v941 = vsel %vm917, %v939, 0.0
    %942 = vadd.xlane.f32.xlu0 %v941
    %v943 = vpop.xlane.xlu0 %942
    %v944 = vsel %vm917, %v940, 0.0
    %945 = vadd.xlane.f32.xlu0 %v944
    %v946 = vpop.xlane.xlu0 %945
    %v947 = vsel %vm294, %v943, 0.0
    %v948 = vrot.slane %v947, 4
    %v949 = vadd.f32 %v947, %v948
    %v950 = vrot.slane %v949, 2
    %v951 = vadd.f32 %v949, %v950
    %v952 = vrot.slane %v951, 1
    %v953 = vadd.f32 %v951, %v952
    %v954 = vsel %vm294, %v946, 0.0
    %v955 = vrot.slane %v954, 4
    %v956 = vadd.f32 %v954, %v955
    %v957 = vrot.slane %v956, 2
    %v958 = vadd.f32 %v956, %v957
    %v959 = vrot.slane %v958, 1
    %v960 = vadd.f32 %v958, %v959
    %v961 = vadd.f32 %v953, %v960
    %v962 = vrcp.pop 98.0
    %v963 = vmul.f32 98.0, %v962
    %v964 = vsub.f32 1.0, %v963
    %v965 = vmul.f32 %v962, %v964
    %v966 = vadd.f32 %v962, %v965
    %vm967 = vweird.f32 %v962
    %v968 = vsel %vm967, %v962, %v966
    %v969 = vmul.f32 %v938, %v968
    %v970 = vmul.f32 %v961, %v968
    %v971 = vmul.f32 %v969, %v969
    %v972 = vsub.f32 %v970, %v971
    %v973 = vmax.f32 %v972, 0.0
    %v974 = vsub.f32 %v913, %v969
    %v975 = vsub.f32 %v914, %v969
    %v976 = vadd.f32 %v973, 1e-05
    %v977 = vrsqrt.pop %v976
    %v978 = vmul.f32 %v977, %v976
    %v979 = vmul.f32 %v978, %v977
    %v980 = vmul.f32 0.5, %v979
    %v981 = vsub.f32 1.5, %v980
    %v982 = vmul.f32 %v977, %v981
    %vm983 = vweird.f32 %v976
    %vm984 = vweird.f32 %v977
    %vm985 = vmor %vm983, %vm984
    %v986 = vsel %vm985, %v977, %v982
    %v987 = vmul.f32 %v974, %v986
    %v988 = vmul.f32 %v975, %v986
    %v989 = vstv %s915
    %v990 = vmul.f32 %v987, %v989
    %v991 = vmul.f32 %v988, %v989
    %v992 = vstv %s916
    %v993 = vadd.f32 %v990, %v992
    %v994 = vadd.f32 %v991, %v992
    %v995 = vmax.f32 %v993, 0.0
    %v996 = vmax.f32 %v994, 0.0
    %s997 = scalar_lea.vmem [#allocation7], 64
    %v998 = vld [vmem:[%s997] sm:$0x7f]
    %v999 = vmul.f32 %v995, %v998
    %v1000 = vmul.f32 %v996, %v998
    %v1001 = vsel %vm917, %v999, 0.0
    %1002 = vadd.xlane.f32.xlu0 %v1001
    %v1003 = vpop.xlane.xlu0 %1002
    %v1004 = vsel %vm917, %v1000, 0.0
    %1005 = vadd.xlane.f32.xlu0 %v1004
    %v1006 = vpop.xlane.xlu0 %1005
    %v1009 = vperm.slane %v1003, %v66
    %v1010 = vperm.slane %v1006, %v66
    %vm1011 = vcmask 1041409
    %v1012 = vsel %vm1011, %v1010, %v1009
    %vm1014 = vcmask 50176
    %v1015 = vsel %vm1014, %v1012, 0.0
    %1016 = vadd.xlane.f32.xlu0 %v1015
    %v1017 = vpop.xlane.xlu0 %1016
    %s1018 = sld [smem:[#allocation2 + $0x16]]
    %v1019 = vstv %s1018
    %v1020 = vadd.f32 %v1017, %v1019
    %v1021 = vsub.f32 0.0, %v1020
    %v1022 = vmul.f32 %v1021, 1.442695
    %v1023 = vpow.pop %v1022
    %v1024 = vadd.f32 %v1023, 1.0
    %v1025 = vrcp.pop %v1024
    %v1026 = vmul.f32 %v1024, %v1025
    %v1027 = vsub.f32 1.0, %v1026
    %v1028 = vmul.f32 %v1025, %v1027
    %v1029 = vadd.f32 %v1025, %v1028
    %vm1030 = vweird.f32 %v1024
    %vm1031 = vweird.f32 %v1025
    %vm1032 = vmor %vm1030, %vm1031
    %v1033 = vsel %vm1032, %v1025, %v1029
    %v1034 = vand.u32 2147483647, %v1024
    %vm1035 = vcmp.eq.f32.partialorder %v1034, 8.507059e+37
    %v1036 = vand.u32 %v1024, 2147483648
    %v1037 = vor.u32 1.1754944e-38, %v1036
    %v1038 = vsel %vm1035, %v1037, %v1033
    %v1039 = vmul.f32 1.0, %v1038
    %v1040 = vmul.f32 %v1039, 50.0
    %v1041 = vadd.f32 %v1040, 10.0
    %vm1042 = vcmp.eq.s32.totalorder %v66, 0
    %vm1043 = vcmp.eq.s32.totalorder %v67, 0
    %vm1044 = vcmp.eq.s32.totalorder %v66, 1
    %vm1045 = vcmp.eq.s32.totalorder %v67, 1
    %vm1046 = vcmp.eq.s32.totalorder %v66, 2
    %vm1047 = vcmp.eq.s32.totalorder %v67, 2
    %vm1048 = vcmp.eq.s32.totalorder %v66, 3
    %vm1049 = vcmp.eq.s32.totalorder %v67, 3
    %v1050 = vsel %vm1048, %v1041, 0.0
    %v1051 = vsel %vm1049, %v1041, 0.0
    %v1052 = vsel %vm1046, %v208, %v1050
    %v1053 = vsel %vm1047, %v208, %v1051
    %v1054 = vsel %vm1044, %v212, %v1052
    %v1055 = vsel %vm1045, %v212, %v1053
    %v1056 = vsel %vm1042, %v191, %v1054
    %v1057 = vsel %vm1043, %v191, %v1055
    %v1060 = vrot.slane %v1057, 6
    %v1061 = vsel %vm80, %v1056, %v1060
    %s1063 = scalar_lea.vmem [#allocation9], 8
    %1064 = vst [vmem:[%s1063] sm:$0xf] %v1061
    // Predicated region
    $region26: #{tpu_custom_call.1} parent=1 // pred_check
      _
    $region27: #{tpu_custom_call.1} parent=1 // pred_check_branch
      %1066 = sbr.rel (0) target = $region29
    $region28: #{tpu_custom_call.1} parent=1 // pred_region
      %1068 = vsyncadd [#allocation4], 0
      %s1069 = sshll.u32 [#allocation9], 4
      %s1070 = int_to_ptr.vmem [resolvable:$true] %s1069
      %s1071 = sshll.u32 %s3, 4
      %s1072 = int_to_ptr.hbm [resolvable:$true] %s1071
      %1077 = dma.vmem_to_hbm [thread:$0]  %s1070, 192, %s1072, [#allocation4], 64, 64, 4
    $region29: #{tpu_custom_call.1} parent=1 // pred_fallthru
      _
    // Predicated region
    $region30: #{tpu_custom_call.1} parent=1 // pred_check
      _
    $region31: #{tpu_custom_call.1} parent=1 // pred_check_branch
      %1079 = sbr.rel (0) target = $region33
    $region32: #{tpu_custom_call.1} parent=1 // pred_region
      %1081 = dma.done [#allocation4], 192
    $region33: #{tpu_custom_call.1} parent=1 // pred_fallthru
      _
    %1082 = vsyncpa [#allocation3], 1
    %1083 = vsyncpa [#allocation8], 1
    %1084 = vsyncpa [#allocation4], 1
    %1085 = vsyncpa [#allocation5], 1

</llo_original>
